<compile_context>
chip_gen: v7x
topology: tpu7x:2x2x1
jax: 0.10.0
libtpu: 0.0.40
codegen_flags: <defaults>
</compile_context>

<pallas_src>
import jax
import jax.numpy as jnp
from jax.experimental import pallas as pl
from jax.experimental.pallas import tpu as pltpu


# --------------------------------------------------------------------------
# Pallas kernel: fused Linear(D, M) -> SiLU -> Linear(M, D), lane-dense tiles
# --------------------------------------------------------------------------

def _ffn_kernel(x_ref, w1_ref, b1_ref, w2_ref, b2_ref, o_ref):
    # x_ref:  (TM, D)        activations, already in the matmul dtype
    # w1_ref: (D,  Mp)  b1_ref: (1, Mp)   Mp % 128 == 0 (lane-dense hidden)
    # w2_ref: (Mp, Dp)  b2_ref: (1, Dp)   Dp % 128 == 0 (lane-dense output)
    # o_ref:  (TM, Dp)

    # First matmul on the MXU, f32 accumulation.
    h = jnp.dot(x_ref[...], w1_ref[...], preferred_element_type=jnp.float32)
    h = h + b1_ref[...]                       # bias in f32

    # SiLU in f32 on full 128-lane vregs (VPU mul + EUP sigmoid).
    h = h * jax.nn.sigmoid(h)

    # Second matmul (cast the MXU operand only; accumulate in f32).
    y = jnp.dot(h.astype(w2_ref.dtype), w2_ref[...],
                preferred_element_type=jnp.float32)
    y = y + b2_ref[...]

    # Lane-dense (TM, Dp) store -> unmasked vst.
    o_ref[...] = y.astype(o_ref.dtype)


# --------------------------------------------------------------------------
# Wrapper
# --------------------------------------------------------------------------

def _round_up(v, m):
    return (v + m - 1) // m * m


def _pick_block_m(n_rows, requested):
    if requested is None:
        if n_rows <= 1024:
            requested = n_rows      # 1 step: per-step overhead dominates here
        else:
            requested = 512         # multiple steps: pipelining + v7x sharding
    if requested >= n_rows:
        return n_rows               # full-extent block is always legal
    return max(8, (requested // 8) * 8)   # tiled sublane dim must be mult. of 8


def feedforward(x, w1, b1, w2, b2, *, block_m=None, mxu_dtype=jnp.float32,
                out_dtype=None):
    """Fused FeedForward.  x: (..., dim) -> (..., dim).

    w1: (dim, mlp_dim), b1: (mlp_dim,) or (1, mlp_dim)   [PyTorch weight.T]
    w2: (mlp_dim, dim), b2: (dim,)     or (1, dim)
    """
    orig_shape = x.shape
    D, Mhid = w1.shape
    assert orig_shape[-1] == D, "last dim of x must equal dim"
    assert w2.shape == (Mhid, D), "w2 must be (mlp_dim, dim)"
    out_dtype = x.dtype if out_dtype is None else out_dtype

    # Normalize biases to (1, features) in f32 (added after f32 accumulation).
    b1 = jnp.asarray(b1, jnp.float32).reshape(1, Mhid)
    b2 = jnp.asarray(b2, jnp.float32).reshape(1, D)

    # Lane-dense padding of hidden / output feature axes (exact: zeros only).
    Mp = _round_up(Mhid, 128)
    Dp = _round_up(D, 128)
    w1p = jnp.pad(w1.astype(mxu_dtype), ((0, 0), (0, Mp - Mhid)))
    b1p = jnp.pad(b1, ((0, 0), (0, Mp - Mhid)))
    w2p = jnp.pad(w2.astype(mxu_dtype), ((0, Mp - Mhid), (0, Dp - D)))
    b2p = jnp.pad(b2, ((0, 0), (0, Dp - D)))

    # Flatten all leading dims into the row axis; cast activations once here
    # (bf16 path: halves activation DMA bytes, no in-kernel casts).
    x2 = x.reshape(-1, D).astype(mxu_dtype)
    n_rows = x2.shape[0]

    bm = _pick_block_m(n_rows, block_m)
    grid = (pl.cdiv(n_rows, bm),)   # ragged last tile handled by Pallas bounds

    # Advisory cost estimate for XLA's scheduler.
    op_itemsize = jnp.dtype(mxu_dtype).itemsize
    out_itemsize = jnp.dtype(out_dtype).itemsize
    bytes_accessed = int(
        n_rows * D * op_itemsize            # activations in
        + (w1p.size + w2p.size) * op_itemsize
        + (b1p.size + b2p.size) * 4
        + n_rows * Dp * out_itemsize        # output
    )
    cost = pl.CostEstimate(
        flops=int(2 * n_rows * D * Mp + 2 * n_rows * Mp * Dp),
        transcendentals=int(n_rows * Mp),
        bytes_accessed=bytes_accessed,
    )

    # Only raise the scoped-VMEM limit if the footprint approaches the default.
    vmem_need = (
        2 * bm * D * op_itemsize            # in tile, double-buffered
        + 2 * bm * Dp * out_itemsize        # out tile, double-buffered
        + bm * Mp * 4                       # f32 hidden intermediate
        + 2 * ((w1p.size + w2p.size) * op_itemsize + (b1p.size + b2p.size) * 4)
    )
    cp_kwargs = dict(dimension_semantics=("parallel",))
    if vmem_need > (24 << 20):
        cp_kwargs["vmem_limit_bytes"] = int(min(int(1.3 * vmem_need) + (2 << 20),
                                                128 << 20))

    out = pl.pallas_call(
        _ffn_kernel,
        out_shape=jax.ShapeDtypeStruct((n_rows, Dp), out_dtype),
        grid=grid,
        in_specs=[
            pl.BlockSpec((bm, D), lambda i: (i, 0)),    # activations (row-tiled)
            pl.BlockSpec((D, Mp), lambda i: (0, 0)),    # w1 (resident)
            pl.BlockSpec((1, Mp), lambda i: (0, 0)),    # b1
            pl.BlockSpec((Mp, Dp), lambda i: (0, 0)),   # w2 (resident)
            pl.BlockSpec((1, Dp), lambda i: (0, 0)),    # b2
        ],
        out_specs=pl.BlockSpec((bm, Dp), lambda i: (i, 0)),
        compiler_params=pltpu.CompilerParams(**cp_kwargs),
        cost_estimate=cost,
    )(x2, w1p, b1p, w2p, b2p)

    if Dp != D:
        out = out[:, :D]
    return out.reshape(orig_shape[:-1] + (D,)).astype(out_dtype)


# --------------------------------------------------------------------------
# Pure-JAX reference (same math, no Pallas)
# --------------------------------------------------------------------------

def reference_forward(x, w1, b1, w2, b2, mxu_dtype=jnp.float32):
    D, Mhid = w1.shape
    x2 = x.reshape(-1, D).astype(mxu_dtype)
    h = jnp.dot(x2, w1.astype(mxu_dtype),
                preferred_element_type=jnp.float32) + b1.reshape(1, Mhid)
    h = h * jax.nn.sigmoid(h)
    y = jnp.dot(h.astype(mxu_dtype), w2.astype(mxu_dtype),
                preferred_element_type=jnp.float32) + b2.reshape(1, D)
    return y.reshape(x.shape[:-1] + (D,)).astype(x.dtype)


# --------------------------------------------------------------------------
# Demo / correctness check
# --------------------------------------------------------------------------

if __name__ == "__main__":
    # Shapes consistent with FeedForward's use inside MobileViT:
    # x is (bs, ph*pw, nh*nw, dim) = (2, 16, 16, 32), mlp_dim = 64.
    B, P, N = 2, 16, 16
    dim, mlp_dim = 32, 64

    key = jax.random.PRNGKey(0)
    kx, k1, kb1, k2, kb2 = jax.random.split(key, 5)
    x = jax.random.normal(kx, (B, P, N, dim), jnp.float32)
    w1 = jax.random.normal(k1, (dim, mlp_dim), jnp.float32) * (1.0 / jnp.sqrt(dim))
    b1 = jax.random.normal(kb1, (mlp_dim,), jnp.float32) * 0.01   # 1-D like nn.Linear
    w2 = jax.random.normal(k2, (mlp_dim, dim), jnp.float32) * (1.0 / jnp.sqrt(mlp_dim))
    b2 = jax.random.normal(kb2, (dim,), jnp.float32) * 0.01

    ref = reference_forward(x, w1, b1, w2, b2, jnp.float32)
    tol = 1e-3 * (1.0 + float(jnp.max(jnp.abs(ref))))

    # --- f32 path, adaptive block_m (single grid step at this size) ---
    out = jax.block_until_ready(feedforward(x, w1, b1, w2, b2))
    assert out.shape == (B, P, N, dim)
    err = float(jnp.max(jnp.abs(out - ref)))
    if err > tol:
        raise AssertionError(f"f32 Pallas FFN mismatch: max abs err {err} > {tol}")

    # --- f32 path, explicit multi-step tiling (exercises the grid/pipeline) ---
    out_t = jax.block_until_ready(feedforward(x, w1, b1, w2, b2, block_m=128))
    err_t = float(jnp.max(jnp.abs(out_t - ref)))
    if err_t > tol:
        raise AssertionError(f"tiled Pallas FFN mismatch: max abs err {err_t} > {tol}")

    # --- bf16-operand path (v5e/v6e/v7x MXU-friendly), checked against a
    #     reference performing the same bf16 casts ---
    out_bf = jax.block_until_ready(
        feedforward(x, w1, b1, w2, b2, mxu_dtype=jnp.bfloat16))
    ref_bf = reference_forward(x, w1, b1, w2, b2, jnp.bfloat16)
    err_bf = float(jnp.max(jnp.abs(out_bf - ref_bf)))
    tol_bf = 5e-3 * (1.0 + float(jnp.max(jnp.abs(ref_bf))))
    if err_bf > tol_bf:
        raise AssertionError(f"bf16 Pallas FFN mismatch: max abs err {err_bf} > {tol_bf}")

    print("KERNEL_OK")
</pallas_src>

<mosaic_0001>
module attributes {stable_mosaic.version = 11 : i64} {
  func.func @_ffn_kernel(%arg0: i32, %arg1: memref<512x32xf32, #tpu.memory_space<vmem>>, %arg2: memref<32x128xf32, #tpu.memory_space<vmem>>, %arg3: memref<1x128xf32, #tpu.memory_space<vmem>>, %arg4: memref<128x128xf32, #tpu.memory_space<vmem>>, %arg5: memref<1x128xf32, #tpu.memory_space<vmem>>, %arg6: memref<512x128xf32, #tpu.memory_space<vmem>>) attributes {dimension_semantics = [#tpu.dimension_semantics<parallel>], iteration_bounds = array<i64: 1>, scalar_prefetch = 0 : i64, scratch_operands = 0 : i64, tpu.core_type = #tpu.core_type<tc>, window_params = [{transform_indices = @transform_0, window_bounds = array<i64: 512, 32>}, {pipeline_mode = #tpu.pipeline_mode<synchronous>, transform_indices = @transform_1, window_bounds = array<i64: 32, 128>}, {pipeline_mode = #tpu.pipeline_mode<synchronous>, transform_indices = @transform_2, window_bounds = array<i64: 1, 128>}, {pipeline_mode = #tpu.pipeline_mode<synchronous>, transform_indices = @transform_3, window_bounds = array<i64: 128, 128>}, {pipeline_mode = #tpu.pipeline_mode<synchronous>, transform_indices = @transform_4, window_bounds = array<i64: 1, 128>}, {transform_indices = @transform_5, window_bounds = array<i64: 512, 128>}]} {
    %c0 = arith.constant 0 : index
    %c0_0 = arith.constant 0 : index
    %0 = vector.load %arg1[%c0, %c0_0] : memref<512x32xf32, #tpu.memory_space<vmem>>, vector<512x32xf32>
    %c0_1 = arith.constant 0 : index
    %c0_2 = arith.constant 0 : index
    %1 = vector.load %arg2[%c0_1, %c0_2] : memref<32x128xf32, #tpu.memory_space<vmem>>, vector<32x128xf32>
    %cst = arith.constant dense<0.000000e+00> : vector<512x128xf32>
    %2 = tpu.matmul %0, %1, %cst {dimension_numbers = #tpu.dot_dimension_numbers<[1], [0], [0], [1], [0, 0, 1, 1], [], []>} : vector<512x32xf32>, vector<32x128xf32>, vector<512x128xf32> -> vector<512x128xf32>
    %c0_3 = arith.constant 0 : index
    %c0_4 = arith.constant 0 : index
    %3 = vector.load %arg3[%c0_3, %c0_4] : memref<1x128xf32, #tpu.memory_space<vmem>>, vector<1x128xf32>
    %4 = vector.broadcast %3 : vector<1x128xf32> to vector<512x128xf32>
    %5 = arith.addf %2, %4 : vector<512x128xf32>
    %6 = arith.negf %5 : vector<512x128xf32>
    %7 = math.exp %6 : vector<512x128xf32>
    %cst_5 = arith.constant 1.000000e+00 : f32
    %8 = vector.broadcast %cst_5 : f32 to vector<512x128xf32>
    %9 = arith.addf %8, %7 : vector<512x128xf32>
    %10 = arith.divf %8, %9 : vector<512x128xf32>
    %11 = arith.mulf %5, %10 : vector<512x128xf32>
    %c0_6 = arith.constant 0 : index
    %c0_7 = arith.constant 0 : index
    %12 = vector.load %arg4[%c0_6, %c0_7] : memref<128x128xf32, #tpu.memory_space<vmem>>, vector<128x128xf32>
    %cst_8 = arith.constant dense<0.000000e+00> : vector<512x128xf32>
    %13 = tpu.matmul %11, %12, %cst_8 {dimension_numbers = #tpu.dot_dimension_numbers<[1], [0], [0], [1], [0, 0, 1, 1], [], []>} : vector<512x128xf32>, vector<128x128xf32>, vector<512x128xf32> -> vector<512x128xf32>
    %c0_9 = arith.constant 0 : index
    %c0_10 = arith.constant 0 : index
    %14 = vector.load %arg5[%c0_9, %c0_10] : memref<1x128xf32, #tpu.memory_space<vmem>>, vector<1x128xf32>
    %15 = vector.broadcast %14 : vector<1x128xf32> to vector<512x128xf32>
    %16 = arith.addf %13, %15 : vector<512x128xf32>
    %c0_11 = arith.constant 0 : index
    %c0_12 = arith.constant 0 : index
    %17 = vector.load %arg6[%c0_11, %c0_12] : memref<512x128xf32, #tpu.memory_space<vmem>>, vector<512x128xf32>
    tpu.vector_store %arg6[%c0_11, %c0_12], %16 {strides = array<i32>} : memref<512x128xf32, #tpu.memory_space<vmem>>, vector<512x128xf32>,
    return
  }
  func.func @transform_0(%arg0: i32) -> (i32, i32) {
    %c0_i32 = arith.constant 0 : i32
    %c0_i32_0 = arith.constant 0 : i32
    return %arg0, %c0_i32 : i32, i32
  }
  func.func @transform_1(%arg0: i32) -> (i32, i32) {
    %c0_i32 = arith.constant 0 : i32
    %c0_i32_0 = arith.constant 0 : i32
    %c0_i32_1 = arith.constant 0 : i32
    return %c0_i32, %c0_i32_0 : i32, i32
  }
  func.func @transform_2(%arg0: i32) -> (i32, i32) {
    %c0_i32 = arith.constant 0 : i32
    %c0_i32_0 = arith.constant 0 : i32
    %c0_i32_1 = arith.constant 0 : i32
    return %c0_i32, %c0_i32_0 : i32, i32
  }
  func.func @transform_3(%arg0: i32) -> (i32, i32) {
    %c0_i32 = arith.constant 0 : i32
    %c0_i32_0 = arith.constant 0 : i32
    %c0_i32_1 = arith.constant 0 : i32
    return %c0_i32, %c0_i32_0 : i32, i32
  }
  func.func @transform_4(%arg0: i32) -> (i32, i32) {
    %c0_i32 = arith.constant 0 : i32
    %c0_i32_0 = arith.constant 0 : i32
    %c0_i32_1 = arith.constant 0 : i32
    return %c0_i32, %c0_i32_0 : i32, i32
  }
  func.func @transform_5(%arg0: i32) -> (i32, i32) {
    %c0_i32 = arith.constant 0 : i32
    %c0_i32_0 = arith.constant 0 : i32
    return %arg0, %c0_i32 : i32, i32
  }
}

</mosaic_0001>

<llo_original>
// kernel: tpu_custom_call.1
$region0: #{tpu_custom_call.1}
  #allocation0 [shape = 'u32[]', space=smem, size = 0x4, offset = 0x4, fixed_abs, tag = 'smem constant byte address 0x4 - core index']
  #allocation1 [shape = 'u32[144,128]{1,0:T(1,128)}', space=vmem, size = 0x12000, scoped, tag = 'internal scratch']
  %s0 = inlined_call_operand.vmem [shape: f32[512,32], index: 0, kind: input, shape index: {}]
  %s1 = inlined_call_operand.vmem [shape: f32[32,128], index: 1, kind: input, shape index: {}]
  %s2 = inlined_call_operand.vmem [shape: f32[1,128], index: 2, kind: input, shape index: {}]
  %s3 = inlined_call_operand.vmem [shape: f32[128,128], index: 3, kind: input, shape index: {}]
  %s4 = inlined_call_operand.vmem [shape: f32[1,128], index: 4, kind: input, shape index: {}]
  %s5 = inlined_call_operand.hbm [shape: f32[512,128], index: 5, kind: output, shape index: {}]
  %s6 = sld [smem:[#allocation0]]
  $region30: #{tpu_custom_call.1} parent=0
    _
  %s8 = ssub.s32 1, %s6
  %s9 = scalar_select 0, %s8, %s6
  $region1: #{tpu_custom_call.1} parent=0
    #allocation2 [shape = 'u8[262144]{0}', space=vmem, size = 0x40000, scoped, tag = 'output window, operand 0, single buffered']
    #allocation3 [shape = 's32[1]{0}', space=sflag, size = 0x4, scoped, tag = 'scoped memory for tpu_custom_call.1']
    %10 = vsyncpa [#allocation3], 0
    // Predicated region
    $region2: #{tpu_custom_call.1} parent=1 // pred_check
      _
    $region3: #{tpu_custom_call.1} parent=1 // pred_check_branch
      %12 = sbr.rel (0) target = $region5
    $region4: #{tpu_custom_call.1} parent=1 // pred_region
      _
    $region5: #{tpu_custom_call.1} parent=1 // pred_fallthru
      _
    // Predicated region
    $region6: #{tpu_custom_call.1} parent=1 // pred_check
      _
    $region7: #{tpu_custom_call.1} parent=1 // pred_check_branch
      %14 = sbr.rel (0) target = $region9
    $region8: #{tpu_custom_call.1} parent=1 // pred_region
      _
    $region9: #{tpu_custom_call.1} parent=1 // pred_fallthru
      _
    // Predicated region
    $region10: #{tpu_custom_call.1} parent=1 // pred_check
      _
    $region11: #{tpu_custom_call.1} parent=1 // pred_check_branch
      %16 = sbr.rel (0) target = $region13
    $region12: #{tpu_custom_call.1} parent=1 // pred_region
      _
    $region13: #{tpu_custom_call.1} parent=1 // pred_fallthru
      _
    // Predicated region
    $region14: #{tpu_custom_call.1} parent=1 // pred_check
      _
    $region15: #{tpu_custom_call.1} parent=1 // pred_check_branch
      %18 = sbr.rel (0) target = $region17
    $region16: #{tpu_custom_call.1} parent=1 // pred_region
      _
    $region17: #{tpu_custom_call.1} parent=1 // pred_fallthru
      _
    // Predicated region
    $region18: #{tpu_custom_call.1} parent=1 // pred_check
      _
    $region19: #{tpu_custom_call.1} parent=1 // pred_check_branch
      %20 = sbr.rel (0) target = $region21
    $region20: #{tpu_custom_call.1} parent=1 // pred_region
      _
    $region21: #{tpu_custom_call.1} parent=1 // pred_fallthru
      _
    %v21 = vld [vmem:[%s0] sm:$0xff]
    %v22 = vld [vmem:[%s0 + $0x8] sm:$0xff]
    %v23 = vld [vmem:[%s0 + $0x10] sm:$0xff]
    %v24 = vld [vmem:[%s0 + $0x18] sm:$0xff]
    %v25 = vld [vmem:[%s0 + $0x20] sm:$0xff]
    %v26 = vld [vmem:[%s0 + $0x28] sm:$0xff]
    %v27 = vld [vmem:[%s0 + $0x30] sm:$0xff]
    %v28 = vld [vmem:[%s0 + $0x38] sm:$0xff]
    %v29 = vld [vmem:[%s0 + $0x40] sm:$0xff]
    %v30 = vld [vmem:[%s0 + $0x48] sm:$0xff]
    %v31 = vld [vmem:[%s0 + $0x50] sm:$0xff]
    %v32 = vld [vmem:[%s0 + $0x58] sm:$0xff]
    %v33 = vld [vmem:[%s0 + $0x60] sm:$0xff]
    %v34 = vld [vmem:[%s0 + $0x68] sm:$0xff]
    %v35 = vld [vmem:[%s0 + $0x70] sm:$0xff]
    %v36 = vld [vmem:[%s0 + $0x78] sm:$0xff]
    %v37 = vld [vmem:[%s0 + $0x80] sm:$0xff]
    %v38 = vld [vmem:[%s0 + $0x88] sm:$0xff]
    %v39 = vld [vmem:[%s0 + $0x90] sm:$0xff]
    %v40 = vld [vmem:[%s0 + $0x98] sm:$0xff]
    %v41 = vld [vmem:[%s0 + $0xa0] sm:$0xff]
    %v42 = vld [vmem:[%s0 + $0xa8] sm:$0xff]
    %v43 = vld [vmem:[%s0 + $0xb0] sm:$0xff]
    %v44 = vld [vmem:[%s0 + $0xb8] sm:$0xff]
    %v45 = vld [vmem:[%s0 + $0xc0] sm:$0xff]
    %v46 = vld [vmem:[%s0 + $0xc8] sm:$0xff]
    %v47 = vld [vmem:[%s0 + $0xd0] sm:$0xff]
    %v48 = vld [vmem:[%s0 + $0xd8] sm:$0xff]
    %v49 = vld [vmem:[%s0 + $0xe0] sm:$0xff]
    %v50 = vld [vmem:[%s0 + $0xe8] sm:$0xff]
    %v51 = vld [vmem:[%s0 + $0xf0] sm:$0xff]
    %v52 = vld [vmem:[%s0 + $0xf8] sm:$0xff]
    %v53 = vld [vmem:[%s0 + $0x100] sm:$0xff]
    %v54 = vld [vmem:[%s0 + $0x108] sm:$0xff]
    %v55 = vld [vmem:[%s0 + $0x110] sm:$0xff]
    %v56 = vld [vmem:[%s0 + $0x118] sm:$0xff]
    %v57 = vld [vmem:[%s0 + $0x120] sm:$0xff]
    %v58 = vld [vmem:[%s0 + $0x128] sm:$0xff]
    %v59 = vld [vmem:[%s0 + $0x130] sm:$0xff]
    %v60 = vld [vmem:[%s0 + $0x138] sm:$0xff]
    %v61 = vld [vmem:[%s0 + $0x140] sm:$0xff]
    %v62 = vld [vmem:[%s0 + $0x148] sm:$0xff]
    %v63 = vld [vmem:[%s0 + $0x150] sm:$0xff]
    %v64 = vld [vmem:[%s0 + $0x158] sm:$0xff]
    %v65 = vld [vmem:[%s0 + $0x160] sm:$0xff]
    %v66 = vld [vmem:[%s0 + $0x168] sm:$0xff]
    %v67 = vld [vmem:[%s0 + $0x170] sm:$0xff]
    %v68 = vld [vmem:[%s0 + $0x178] sm:$0xff]
    %v69 = vld [vmem:[%s0 + $0x180] sm:$0xff]
    %v70 = vld [vmem:[%s0 + $0x188] sm:$0xff]
    %v71 = vld [vmem:[%s0 + $0x190] sm:$0xff]
    %v72 = vld [vmem:[%s0 + $0x198] sm:$0xff]
    %v73 = vld [vmem:[%s0 + $0x1a0] sm:$0xff]
    %v74 = vld [vmem:[%s0 + $0x1a8] sm:$0xff]
    %v75 = vld [vmem:[%s0 + $0x1b0] sm:$0xff]
    %v76 = vld [vmem:[%s0 + $0x1b8] sm:$0xff]
    %v77 = vld [vmem:[%s0 + $0x1c0] sm:$0xff]
    %v78 = vld [vmem:[%s0 + $0x1c8] sm:$0xff]
    %v79 = vld [vmem:[%s0 + $0x1d0] sm:$0xff]
    %v80 = vld [vmem:[%s0 + $0x1d8] sm:$0xff]
    %v81 = vld [vmem:[%s0 + $0x1e0] sm:$0xff]
    %v82 = vld [vmem:[%s0 + $0x1e8] sm:$0xff]
    %v83 = vld [vmem:[%s0 + $0x1f0] sm:$0xff]
    %v84 = vld [vmem:[%s0 + $0x1f8] sm:$0xff]
    %v85 = vld [vmem:[%s1] sm:$0xff]
    %v86 = vld [vmem:[%s1 + $0x8] sm:$0xff]
    %v87 = vld [vmem:[%s1 + $0x10] sm:$0xff]
    %v88 = vld [vmem:[%s1 + $0x18] sm:$0xff]
    %v89 = vld [vmem:[%s2] sm:$0x1]
    %v91 = vlaneseq
    %v92 = vshrl.u32 %v91, 7
    %v93 = vsub.s32 0, %v92
    %v94 = vrot.slane %v89, %v93
    %vm96 = vcmask 261120
    %v98 = vsel %vm96, %v21, 0
    %v101 = vsel %vm96, %v22, 0
    %v104 = vsel %vm96, %v23, 0
    %v107 = vsel %vm96, %v24, 0
    %v110 = vsel %vm96, %v25, 0
    %v113 = vsel %vm96, %v26, 0
    %v116 = vsel %vm96, %v27, 0
    %v119 = vsel %vm96, %v28, 0
    %v122 = vsel %vm96, %v29, 0
    %v125 = vsel %vm96, %v30, 0
    %v128 = vsel %vm96, %v31, 0
    %v131 = vsel %vm96, %v32, 0
    %v134 = vsel %vm96, %v33, 0
    %v137 = vsel %vm96, %v34, 0
    %v140 = vsel %vm96, %v35, 0
    %v143 = vsel %vm96, %v36, 0
    %v146 = vsel %vm96, %v37, 0
    %v149 = vsel %vm96, %v38, 0
    %v152 = vsel %vm96, %v39, 0
    %v155 = vsel %vm96, %v40, 0
    %v158 = vsel %vm96, %v41, 0
    %v161 = vsel %vm96, %v42, 0
    %v164 = vsel %vm96, %v43, 0
    %v167 = vsel %vm96, %v44, 0
    %v170 = vsel %vm96, %v45, 0
    %v173 = vsel %vm96, %v46, 0
    %v176 = vsel %vm96, %v47, 0
    %v179 = vsel %vm96, %v48, 0
    %v182 = vsel %vm96, %v49, 0
    %v185 = vsel %vm96, %v50, 0
    %v188 = vsel %vm96, %v51, 0
    %v191 = vsel %vm96, %v52, 0
    %v194 = vsel %vm96, %v53, 0
    %v197 = vsel %vm96, %v54, 0
    %v200 = vsel %vm96, %v55, 0
    %v203 = vsel %vm96, %v56, 0
    %v206 = vsel %vm96, %v57, 0
    %v209 = vsel %vm96, %v58, 0
    %v212 = vsel %vm96, %v59, 0
    %v215 = vsel %vm96, %v60, 0
    %v218 = vsel %vm96, %v61, 0
    %v221 = vsel %vm96, %v62, 0
    %v224 = vsel %vm96, %v63, 0
    %v227 = vsel %vm96, %v64, 0
    %v230 = vsel %vm96, %v65, 0
    %v233 = vsel %vm96, %v66, 0
    %v236 = vsel %vm96, %v67, 0
    %v239 = vsel %vm96, %v68, 0
    %v242 = vsel %vm96, %v69, 0
    %v245 = vsel %vm96, %v70, 0
    %v248 = vsel %vm96, %v71, 0
    %v251 = vsel %vm96, %v72, 0
    %v254 = vsel %vm96, %v73, 0
    %v257 = vsel %vm96, %v74, 0
    %v260 = vsel %vm96, %v75, 0
    %v263 = vsel %vm96, %v76, 0
    %v266 = vsel %vm96, %v77, 0
    %v269 = vsel %vm96, %v78, 0
    %v272 = vsel %vm96, %v79, 0
    %v275 = vsel %vm96, %v80, 0
    %v278 = vsel %vm96, %v81, 0
    %v281 = vsel %vm96, %v82, 0
    %v284 = vsel %vm96, %v83, 0
    %v287 = vsel %vm96, %v84, 0
    %289 = vmatprep.subr.mxu0 0.0
    %290 = vmatpush1.msra.mxu0 %v85
    %291 = vmatprep.subr.mxu0 0.0
    %292 = vmatpush1.msra.mxu0 %v86
    %293 = vmatprep.subr.mxu0 0.0
    %294 = vmatpush1.msra.mxu0 %v87
    %295 = vmatprep.subr.mxu0 0.0
    %296 = vmatpush1.msra.mxu0 %v88
    %297 = vmatprep.subr.mxu0 0.0
    %298 = vmatpush1.msra.mxu0 0.0
    %299 = vmatprep.subr.mxu0 0.0
    %300 = vmatpush1.msra.mxu0 0.0
    %301 = vmatprep.subr.mxu0 0.0
    %302 = vmatpush1.msra.mxu0 0.0
    %303 = vmatprep.subr.mxu0 0.0
    %304 = vmatpush1.msra.mxu0 0.0
    %305 = vmatprep.subr.mxu0 0.0
    %306 = vmatpush1.msra.mxu0 0.0
    %307 = vmatprep.subr.mxu0 0.0
    %308 = vmatpush1.msra.mxu0 0.0
    %309 = vmatprep.subr.mxu0 0.0
    %310 = vmatpush1.msra.mxu0 0.0
    %311 = vmatprep.subr.mxu0 0.0
    %312 = vmatpush1.msra.mxu0 0.0
    %313 = vmatprep.subr.mxu0 0.0
    %314 = vmatpush1.msra.mxu0 0.0
    %315 = vmatprep.subr.mxu0 0.0
    %316 = vmatpush1.msra.mxu0 0.0
    %317 = vmatprep.subr.mxu0 0.0
    %318 = vmatpush1.msra.mxu0 0.0
    %319 = vmatprep.subr.mxu0 0.0
    %320 = vmatpush1.msra.mxu0 0.0
    %321 = vmatprep.subr.mxu0 0.0
    %322 = vmatpush1.msra.mxu0 0.0
    %323 = vmatprep.subr.mxu0 0.0
    %324 = vmatpush1.msra.mxu0 0.0
    %325 = vmatprep.subr.mxu0 0.0
    %326 = vmatpush1.msra.mxu0 0.0
    %327 = vmatprep.subr.mxu0 0.0
    %328 = vmatpush1.msra.mxu0 0.0
    %329 = vmatprep.subr.mxu0 0.0
    %330 = vmatpush1.msra.mxu0 0.0
    %331 = vmatprep.subr.mxu0 0.0
    %332 = vmatpush1.msra.mxu0 0.0
    %333 = vmatprep.subr.mxu0 0.0
    %334 = vmatpush1.msra.mxu0 0.0
    %335 = vmatprep.subr.mxu0 0.0
    %336 = vmatpush1.msra.mxu0 0.0
    %337 = vmatprep.subr.mxu0 0.0
    %338 = vmatpush1.msra.mxu0 0.0
    %339 = vmatprep.subr.mxu0 0.0
    %340 = vmatpush1.msra.mxu0 0.0
    %341 = vmatprep.subr.mxu0 0.0
    %342 = vmatpush1.msra.mxu0 0.0
    %343 = vmatprep.subr.mxu0 0.0
    %344 = vmatpush1.msra.mxu0 0.0
    %345 = vmatprep.subr.mxu0 0.0
    %346 = vmatpush1.msra.mxu0 0.0
    %347 = vmatprep.subr.mxu0 0.0
    %348 = vmatpush1.msra.mxu0 0.0
    %349 = vmatprep.subr.mxu0 0.0
    %350 = vmatpush1.msra.mxu0 0.0
    %351 = vmatprep.subr.mxu0 0.0
    %352 = vmatpush1.msra.mxu0 0.0
    %353 = vmatprep.mubr.f32.mxu0 0.0
    %354 = vmatmul.mubr.f32.gmra.mrb[0].mxu0 %v98
    %v355 = vpop.f32.mrb[0].mxu0
    %v356 = vadd.f32 %v94, %v355
    %v357 = vpop.f32.mrb[0].mxu0
    %358 = vmatprep.mubr.f32.mxu0 0.0
    %359 = vmatmul.mubr.f32.gmra.mrb[0].mxu0 %v101
    %v360 = vpop.f32.mrb[0].mxu0
    %v361 = vadd.f32 %v94, %v360
    %v362 = vpop.f32.mrb[0].mxu0
    %363 = vmatprep.mubr.f32.mxu0 0.0
    %364 = vmatmul.mubr.f32.gmra.mrb[0].mxu0 %v104
    %v365 = vpop.f32.mrb[0].mxu0
    %v366 = vadd.f32 %v94, %v365
    %v367 = vpop.f32.mrb[0].mxu0
    %368 = vmatprep.mubr.f32.mxu0 0.0
    %369 = vmatmul.mubr.f32.gmra.mrb[0].mxu0 %v107
    %v370 = vpop.f32.mrb[0].mxu0
    %v371 = vadd.f32 %v94, %v370
    %v372 = vpop.f32.mrb[0].mxu0
    %373 = vmatprep.mubr.f32.mxu0 0.0
    %374 = vmatmul.mubr.f32.gmra.mrb[0].mxu0 %v110
    %v375 = vpop.f32.mrb[0].mxu0
    %v376 = vadd.f32 %v94, %v375
    %v377 = vpop.f32.mrb[0].mxu0
    %378 = vmatprep.mubr.f32.mxu0 0.0
    %379 = vmatmul.mubr.f32.gmra.mrb[0].mxu0 %v113
    %v380 = vpop.f32.mrb[0].mxu0
    %v381 = vadd.f32 %v94, %v380
    %v382 = vpop.f32.mrb[0].mxu0
    %383 = vmatprep.mubr.f32.mxu0 0.0
    %384 = vmatmul.mubr.f32.gmra.mrb[0].mxu0 %v116
    %v385 = vpop.f32.mrb[0].mxu0
    %v386 = vadd.f32 %v94, %v385
    %v387 = vpop.f32.mrb[0].mxu0
    %388 = vmatprep.mubr.f32.mxu0 0.0
    %389 = vmatmul.mubr.f32.gmra.mrb[0].mxu0 %v119
    %v390 = vpop.f32.mrb[0].mxu0
    %v391 = vadd.f32 %v94, %v390
    %v392 = vpop.f32.mrb[0].mxu0
    %393 = vmatprep.mubr.f32.mxu0 0.0
    %394 = vmatmul.mubr.f32.gmra.mrb[0].mxu0 %v122
    %v395 = vpop.f32.mrb[0].mxu0
    %v396 = vadd.f32 %v94, %v395
    %v397 = vpop.f32.mrb[0].mxu0
    %398 = vmatprep.mubr.f32.mxu0 0.0
    %399 = vmatmul.mubr.f32.gmra.mrb[0].mxu0 %v125
    %v400 = vpop.f32.mrb[0].mxu0
    %v401 = vadd.f32 %v94, %v400
    %v402 = vpop.f32.mrb[0].mxu0
    %403 = vmatprep.mubr.f32.mxu0 0.0
    %404 = vmatmul.mubr.f32.gmra.mrb[0].mxu0 %v128
    %v405 = vpop.f32.mrb[0].mxu0
    %v406 = vadd.f32 %v94, %v405
    %v407 = vpop.f32.mrb[0].mxu0
    %408 = vmatprep.mubr.f32.mxu0 0.0
    %409 = vmatmul.mubr.f32.gmra.mrb[0].mxu0 %v131
    %v410 = vpop.f32.mrb[0].mxu0
    %v411 = vadd.f32 %v94, %v410
    %v412 = vpop.f32.mrb[0].mxu0
    %413 = vmatprep.mubr.f32.mxu0 0.0
    %414 = vmatmul.mubr.f32.gmra.mrb[0].mxu0 %v134
    %v415 = vpop.f32.mrb[0].mxu0
    %v416 = vadd.f32 %v94, %v415
    %v417 = vpop.f32.mrb[0].mxu0
    %418 = vmatprep.mubr.f32.mxu0 0.0
    %419 = vmatmul.mubr.f32.gmra.mrb[0].mxu0 %v137
    %v420 = vpop.f32.mrb[0].mxu0
    %v421 = vadd.f32 %v94, %v420
    %v422 = vpop.f32.mrb[0].mxu0
    %423 = vmatprep.mubr.f32.mxu0 0.0
    %424 = vmatmul.mubr.f32.gmra.mrb[0].mxu0 %v140
    %v425 = vpop.f32.mrb[0].mxu0
    %v426 = vadd.f32 %v94, %v425
    %v427 = vpop.f32.mrb[0].mxu0
    %428 = vmatprep.mubr.f32.mxu0 0.0
    %429 = vmatmul.mubr.f32.gmra.mrb[0].mxu0 %v143
    %v430 = vpop.f32.mrb[0].mxu0
    %v431 = vadd.f32 %v94, %v430
    %v432 = vpop.f32.mrb[0].mxu0
    %433 = vmatprep.mubr.f32.mxu0 0.0
    %434 = vmatmul.mubr.f32.gmra.mrb[0].mxu0 %v146
    %v435 = vpop.f32.mrb[0].mxu0
    %v436 = vadd.f32 %v94, %v435
    %v437 = vpop.f32.mrb[0].mxu0
    %438 = vmatprep.mubr.f32.mxu0 0.0
    %439 = vmatmul.mubr.f32.gmra.mrb[0].mxu0 %v149
    %v440 = vpop.f32.mrb[0].mxu0
    %v441 = vadd.f32 %v94, %v440
    %v442 = vpop.f32.mrb[0].mxu0
    %443 = vmatprep.mubr.f32.mxu0 0.0
    %444 = vmatmul.mubr.f32.gmra.mrb[0].mxu0 %v152
    %v445 = vpop.f32.mrb[0].mxu0
    %v446 = vadd.f32 %v94, %v445
    %v447 = vpop.f32.mrb[0].mxu0
    %448 = vmatprep.mubr.f32.mxu0 0.0
    %449 = vmatmul.mubr.f32.gmra.mrb[0].mxu0 %v155
    %v450 = vpop.f32.mrb[0].mxu0
    %v451 = vadd.f32 %v94, %v450
    %v452 = vpop.f32.mrb[0].mxu0
    %453 = vmatprep.mubr.f32.mxu0 0.0
    %454 = vmatmul.mubr.f32.gmra.mrb[0].mxu0 %v158
    %v455 = vpop.f32.mrb[0].mxu0
    %v456 = vadd.f32 %v94, %v455
    %v457 = vpop.f32.mrb[0].mxu0
    %458 = vmatprep.mubr.f32.mxu0 0.0
    %459 = vmatmul.mubr.f32.gmra.mrb[0].mxu0 %v161
    %v460 = vpop.f32.mrb[0].mxu0
    %v461 = vadd.f32 %v94, %v460
    %v462 = vpop.f32.mrb[0].mxu0
    %463 = vmatprep.mubr.f32.mxu0 0.0
    %464 = vmatmul.mubr.f32.gmra.mrb[0].mxu0 %v164
    %v465 = vpop.f32.mrb[0].mxu0
    %v466 = vadd.f32 %v94, %v465
    %v467 = vpop.f32.mrb[0].mxu0
    %468 = vmatprep.mubr.f32.mxu0 0.0
    %469 = vmatmul.mubr.f32.gmra.mrb[0].mxu0 %v167
    %v470 = vpop.f32.mrb[0].mxu0
    %v471 = vadd.f32 %v94, %v470
    %v472 = vpop.f32.mrb[0].mxu0
    %473 = vmatprep.mubr.f32.mxu0 0.0
    %474 = vmatmul.mubr.f32.gmra.mrb[0].mxu0 %v170
    %v475 = vpop.f32.mrb[0].mxu0
    %v476 = vadd.f32 %v94, %v475
    %v477 = vpop.f32.mrb[0].mxu0
    %478 = vmatprep.mubr.f32.mxu0 0.0
    %479 = vmatmul.mubr.f32.gmra.mrb[0].mxu0 %v173
    %v480 = vpop.f32.mrb[0].mxu0
    %v481 = vadd.f32 %v94, %v480
    %v482 = vpop.f32.mrb[0].mxu0
    %483 = vmatprep.mubr.f32.mxu0 0.0
    %484 = vmatmul.mubr.f32.gmra.mrb[0].mxu0 %v176
    %v485 = vpop.f32.mrb[0].mxu0
    %v486 = vadd.f32 %v94, %v485
    %v487 = vpop.f32.mrb[0].mxu0
    %488 = vmatprep.mubr.f32.mxu0 0.0
    %489 = vmatmul.mubr.f32.gmra.mrb[0].mxu0 %v179
    %v490 = vpop.f32.mrb[0].mxu0
    %v491 = vadd.f32 %v94, %v490
    %v492 = vpop.f32.mrb[0].mxu0
    %493 = vmatprep.mubr.f32.mxu0 0.0
    %494 = vmatmul.mubr.f32.gmra.mrb[0].mxu0 %v182
    %v495 = vpop.f32.mrb[0].mxu0
    %v496 = vadd.f32 %v94, %v495
    %v497 = vpop.f32.mrb[0].mxu0
    %498 = vmatprep.mubr.f32.mxu0 0.0
    %499 = vmatmul.mubr.f32.gmra.mrb[0].mxu0 %v185
    %v500 = vpop.f32.mrb[0].mxu0
    %v501 = vadd.f32 %v94, %v500
    %v502 = vpop.f32.mrb[0].mxu0
    %503 = vmatprep.mubr.f32.mxu0 0.0
    %504 = vmatmul.mubr.f32.gmra.mrb[0].mxu0 %v188
    %v505 = vpop.f32.mrb[0].mxu0
    %v506 = vadd.f32 %v94, %v505
    %v507 = vpop.f32.mrb[0].mxu0
    %508 = vmatprep.mubr.f32.mxu0 0.0
    %509 = vmatmul.mubr.f32.gmra.mrb[0].mxu0 %v191
    %v510 = vpop.f32.mrb[0].mxu0
    %v511 = vadd.f32 %v94, %v510
    %v512 = vpop.f32.mrb[0].mxu0
    %513 = vmatprep.mubr.f32.mxu0 0.0
    %514 = vmatmul.mubr.f32.gmra.mrb[0].mxu0 %v194
    %v515 = vpop.f32.mrb[0].mxu0
    %v516 = vadd.f32 %v94, %v515
    %v517 = vpop.f32.mrb[0].mxu0
    %518 = vmatprep.mubr.f32.mxu0 0.0
    %519 = vmatmul.mubr.f32.gmra.mrb[0].mxu0 %v197
    %v520 = vpop.f32.mrb[0].mxu0
    %v521 = vadd.f32 %v94, %v520
    %v522 = vpop.f32.mrb[0].mxu0
    %523 = vmatprep.mubr.f32.mxu0 0.0
    %524 = vmatmul.mubr.f32.gmra.mrb[0].mxu0 %v200
    %v525 = vpop.f32.mrb[0].mxu0
    %v526 = vadd.f32 %v94, %v525
    %v527 = vpop.f32.mrb[0].mxu0
    %528 = vmatprep.mubr.f32.mxu0 0.0
    %529 = vmatmul.mubr.f32.gmra.mrb[0].mxu0 %v203
    %v530 = vpop.f32.mrb[0].mxu0
    %v531 = vadd.f32 %v94, %v530
    %v532 = vpop.f32.mrb[0].mxu0
    %533 = vmatprep.mubr.f32.mxu0 0.0
    %534 = vmatmul.mubr.f32.gmra.mrb[0].mxu0 %v206
    %v535 = vpop.f32.mrb[0].mxu0
    %v536 = vadd.f32 %v94, %v535
    %v537 = vpop.f32.mrb[0].mxu0
    %538 = vmatprep.mubr.f32.mxu0 0.0
    %539 = vmatmul.mubr.f32.gmra.mrb[0].mxu0 %v209
    %v540 = vpop.f32.mrb[0].mxu0
    %v541 = vadd.f32 %v94, %v540
    %v542 = vpop.f32.mrb[0].mxu0
    %543 = vmatprep.mubr.f32.mxu0 0.0
    %544 = vmatmul.mubr.f32.gmra.mrb[0].mxu0 %v212
    %v545 = vpop.f32.mrb[0].mxu0
    %v546 = vadd.f32 %v94, %v545
    %v547 = vpop.f32.mrb[0].mxu0
    %548 = vmatprep.mubr.f32.mxu0 0.0
    %549 = vmatmul.mubr.f32.gmra.mrb[0].mxu0 %v215
    %v550 = vpop.f32.mrb[0].mxu0
    %v551 = vadd.f32 %v94, %v550
    %v552 = vpop.f32.mrb[0].mxu0
    %553 = vmatprep.mubr.f32.mxu0 0.0
    %554 = vmatmul.mubr.f32.gmra.mrb[0].mxu0 %v218
    %v555 = vpop.f32.mrb[0].mxu0
    %v556 = vadd.f32 %v94, %v555
    %v557 = vpop.f32.mrb[0].mxu0
    %558 = vmatprep.mubr.f32.mxu0 0.0
    %559 = vmatmul.mubr.f32.gmra.mrb[0].mxu0 %v221
    %v560 = vpop.f32.mrb[0].mxu0
    %v561 = vadd.f32 %v94, %v560
    %v562 = vpop.f32.mrb[0].mxu0
    %563 = vmatprep.mubr.f32.mxu0 0.0
    %564 = vmatmul.mubr.f32.gmra.mrb[0].mxu0 %v224
    %v565 = vpop.f32.mrb[0].mxu0
    %v566 = vadd.f32 %v94, %v565
    %v567 = vpop.f32.mrb[0].mxu0
    %568 = vmatprep.mubr.f32.mxu0 0.0
    %569 = vmatmul.mubr.f32.gmra.mrb[0].mxu0 %v227
    %v570 = vpop.f32.mrb[0].mxu0
    %v571 = vadd.f32 %v94, %v570
    %v572 = vpop.f32.mrb[0].mxu0
    %573 = vmatprep.mubr.f32.mxu0 0.0
    %574 = vmatmul.mubr.f32.gmra.mrb[0].mxu0 %v230
    %v575 = vpop.f32.mrb[0].mxu0
    %v576 = vadd.f32 %v94, %v575
    %v577 = vpop.f32.mrb[0].mxu0
    %578 = vmatprep.mubr.f32.mxu0 0.0
    %579 = vmatmul.mubr.f32.gmra.mrb[0].mxu0 %v233
    %v580 = vpop.f32.mrb[0].mxu0
    %v581 = vadd.f32 %v94, %v580
    %v582 = vpop.f32.mrb[0].mxu0
    %583 = vmatprep.mubr.f32.mxu0 0.0
    %584 = vmatmul.mubr.f32.gmra.mrb[0].mxu0 %v236
    %v585 = vpop.f32.mrb[0].mxu0
    %v586 = vadd.f32 %v94, %v585
    %v587 = vpop.f32.mrb[0].mxu0
    %588 = vmatprep.mubr.f32.mxu0 0.0
    %589 = vmatmul.mubr.f32.gmra.mrb[0].mxu0 %v239
    %v590 = vpop.f32.mrb[0].mxu0
    %v591 = vadd.f32 %v94, %v590
    %v592 = vpop.f32.mrb[0].mxu0
    %593 = vmatprep.mubr.f32.mxu0 0.0
    %594 = vmatmul.mubr.f32.gmra.mrb[0].mxu0 %v242
    %v595 = vpop.f32.mrb[0].mxu0
    %v596 = vadd.f32 %v94, %v595
    %v597 = vpop.f32.mrb[0].mxu0
    %598 = vmatprep.mubr.f32.mxu0 0.0
    %599 = vmatmul.mubr.f32.gmra.mrb[0].mxu0 %v245
    %v600 = vpop.f32.mrb[0].mxu0
    %v601 = vadd.f32 %v94, %v600
    %v602 = vpop.f32.mrb[0].mxu0
    %603 = vmatprep.mubr.f32.mxu0 0.0
    %604 = vmatmul.mubr.f32.gmra.mrb[0].mxu0 %v248
    %v605 = vpop.f32.mrb[0].mxu0
    %v606 = vadd.f32 %v94, %v605
    %v607 = vpop.f32.mrb[0].mxu0
    %608 = vmatprep.mubr.f32.mxu0 0.0
    %609 = vmatmul.mubr.f32.gmra.mrb[0].mxu0 %v251
    %v610 = vpop.f32.mrb[0].mxu0
    %v611 = vadd.f32 %v94, %v610
    %v612 = vpop.f32.mrb[0].mxu0
    %613 = vmatprep.mubr.f32.mxu0 0.0
    %614 = vmatmul.mubr.f32.gmra.mrb[0].mxu0 %v254
    %v615 = vpop.f32.mrb[0].mxu0
    %v616 = vadd.f32 %v94, %v615
    %v617 = vpop.f32.mrb[0].mxu0
    %618 = vmatprep.mubr.f32.mxu0 0.0
    %619 = vmatmul.mubr.f32.gmra.mrb[0].mxu0 %v257
    %v620 = vpop.f32.mrb[0].mxu0
    %v621 = vadd.f32 %v94, %v620
    %v622 = vpop.f32.mrb[0].mxu0
    %623 = vmatprep.mubr.f32.mxu0 0.0
    %624 = vmatmul.mubr.f32.gmra.mrb[0].mxu0 %v260
    %v625 = vpop.f32.mrb[0].mxu0
    %v626 = vadd.f32 %v94, %v625
    %v627 = vpop.f32.mrb[0].mxu0
    %628 = vmatprep.mubr.f32.mxu0 0.0
    %629 = vmatmul.mubr.f32.gmra.mrb[0].mxu0 %v263
    %v630 = vpop.f32.mrb[0].mxu0
    %v631 = vadd.f32 %v94, %v630
    %v632 = vpop.f32.mrb[0].mxu0
    %633 = vmatprep.mubr.f32.mxu0 0.0
    %634 = vmatmul.mubr.f32.gmra.mrb[0].mxu0 %v266
    %v635 = vpop.f32.mrb[0].mxu0
    %v636 = vadd.f32 %v94, %v635
    %v637 = vpop.f32.mrb[0].mxu0
    %638 = vmatprep.mubr.f32.mxu0 0.0
    %639 = vmatmul.mubr.f32.gmra.mrb[0].mxu0 %v269
    %v640 = vpop.f32.mrb[0].mxu0
    %v641 = vadd.f32 %v94, %v640
    %v642 = vpop.f32.mrb[0].mxu0
    %643 = vmatprep.mubr.f32.mxu0 0.0
    %644 = vmatmul.mubr.f32.gmra.mrb[0].mxu0 %v272
    %v645 = vpop.f32.mrb[0].mxu0
    %v646 = vadd.f32 %v94, %v645
    %v647 = vpop.f32.mrb[0].mxu0
    %648 = vmatprep.mubr.f32.mxu0 0.0
    %649 = vmatmul.mubr.f32.gmra.mrb[0].mxu0 %v275
    %v650 = vpop.f32.mrb[0].mxu0
    %v651 = vadd.f32 %v94, %v650
    %v652 = vpop.f32.mrb[0].mxu0
    %653 = vmatprep.mubr.f32.mxu0 0.0
    %654 = vmatmul.mubr.f32.gmra.mrb[0].mxu0 %v278
    %v655 = vpop.f32.mrb[0].mxu0
    %v656 = vadd.f32 %v94, %v655
    %v657 = vpop.f32.mrb[0].mxu0
    %658 = vmatprep.mubr.f32.mxu0 0.0
    %659 = vmatmul.mubr.f32.gmra.mrb[0].mxu0 %v281
    %v660 = vpop.f32.mrb[0].mxu0
    %v661 = vadd.f32 %v94, %v660
    %v662 = vpop.f32.mrb[0].mxu0
    %663 = vmatprep.mubr.f32.mxu0 0.0
    %664 = vmatmul.mubr.f32.gmra.mrb[0].mxu0 %v284
    %v665 = vpop.f32.mrb[0].mxu0
    %v666 = vadd.f32 %v94, %v665
    %v667 = vpop.f32.mrb[0].mxu0
    %668 = vmatprep.mubr.f32.mxu0 0.0
    %669 = vmatmul.mubr.f32.gmra.mrb[0].mxu0 %v287
    %v670 = vpop.f32.mrb[0].mxu0
    %v671 = vadd.f32 %v94, %v670
    %v672 = vpop.f32.mrb[0].mxu0
    %673 = vdwg.mxu0
    %v674 = vxor.u32 %v356, 2147483648
    %v675 = vxor.u32 %v361, 2147483648
    %v676 = vxor.u32 %v366, 2147483648
    %v677 = vxor.u32 %v371, 2147483648
    %v678 = vxor.u32 %v376, 2147483648
    %v679 = vxor.u32 %v381, 2147483648
    %v680 = vxor.u32 %v386, 2147483648
    %v681 = vxor.u32 %v391, 2147483648
    %v682 = vxor.u32 %v396, 2147483648
    %v683 = vxor.u32 %v401, 2147483648
    %v684 = vxor.u32 %v406, 2147483648
    %v685 = vxor.u32 %v411, 2147483648
    %v686 = vxor.u32 %v416, 2147483648
    %v687 = vxor.u32 %v421, 2147483648
    %v688 = vxor.u32 %v426, 2147483648
    %v689 = vxor.u32 %v431, 2147483648
    %v690 = vxor.u32 %v436, 2147483648
    %v691 = vxor.u32 %v441, 2147483648
    %v692 = vxor.u32 %v446, 2147483648
    %v693 = vxor.u32 %v451, 2147483648
    %v694 = vxor.u32 %v456, 2147483648
    %v695 = vxor.u32 %v461, 2147483648
    %v696 = vxor.u32 %v466, 2147483648
    %v697 = vxor.u32 %v471, 2147483648
    %v698 = vxor.u32 %v476, 2147483648
    %v699 = vxor.u32 %v481, 2147483648
    %v700 = vxor.u32 %v486, 2147483648
    %v701 = vxor.u32 %v491, 2147483648
    %v702 = vxor.u32 %v496, 2147483648
    %v703 = vxor.u32 %v501, 2147483648
    %v704 = vxor.u32 %v506, 2147483648
    %v705 = vxor.u32 %v511, 2147483648
    %v706 = vxor.u32 %v516, 2147483648
    %v707 = vxor.u32 %v521, 2147483648
    %v708 = vxor.u32 %v526, 2147483648
    %v709 = vxor.u32 %v531, 2147483648
    %v710 = vxor.u32 %v536, 2147483648
    %v711 = vxor.u32 %v541, 2147483648
    %v712 = vxor.u32 %v546, 2147483648
    %v713 = vxor.u32 %v551, 2147483648
    %v714 = vxor.u32 %v556, 2147483648
    %v715 = vxor.u32 %v561, 2147483648
    %v716 = vxor.u32 %v566, 2147483648
    %v717 = vxor.u32 %v571, 2147483648
    %v718 = vxor.u32 %v576, 2147483648
    %v719 = vxor.u32 %v581, 2147483648
    %v720 = vxor.u32 %v586, 2147483648
    %v721 = vxor.u32 %v591, 2147483648
    %v722 = vxor.u32 %v596, 2147483648
    %v723 = vxor.u32 %v601, 2147483648
    %v724 = vxor.u32 %v606, 2147483648
    %v725 = vxor.u32 %v611, 2147483648
    %v726 = vxor.u32 %v616, 2147483648
    %v727 = vxor.u32 %v621, 2147483648
    %v728 = vxor.u32 %v626, 2147483648
    %v729 = vxor.u32 %v631, 2147483648
    %v730 = vxor.u32 %v636, 2147483648
    %v731 = vxor.u32 %v641, 2147483648
    %v732 = vxor.u32 %v646, 2147483648
    %v733 = vxor.u32 %v651, 2147483648
    %v734 = vxor.u32 %v656, 2147483648
    %v735 = vxor.u32 %v661, 2147483648
    %v736 = vxor.u32 %v666, 2147483648
    %v737 = vxor.u32 %v671, 2147483648
    %v738 = vmul.f32 %v674, 1.442695
    %v739 = vpow.pop %v738
    %v740 = vmul.f32 %v675, 1.442695
    %v741 = vpow.pop %v740
    %v742 = vmul.f32 %v676, 1.442695
    %v743 = vpow.pop %v742
    %v744 = vmul.f32 %v677, 1.442695
    %v745 = vpow.pop %v744
    %v746 = vmul.f32 %v678, 1.442695
    %v747 = vpow.pop %v746
    %v748 = vmul.f32 %v679, 1.442695
    %v749 = vpow.pop %v748
    %v750 = vmul.f32 %v680, 1.442695
    %v751 = vpow.pop %v750
    %v752 = vmul.f32 %v681, 1.442695
    %v753 = vpow.pop %v752
    %v754 = vmul.f32 %v682, 1.442695
    %v755 = vpow.pop %v754
    %v756 = vmul.f32 %v683, 1.442695
    %v757 = vpow.pop %v756
    %v758 = vmul.f32 %v684, 1.442695
    %v759 = vpow.pop %v758
    %v760 = vmul.f32 %v685, 1.442695
    %v761 = vpow.pop %v760
    %v762 = vmul.f32 %v686, 1.442695
    %v763 = vpow.pop %v762
    %v764 = vmul.f32 %v687, 1.442695
    %v765 = vpow.pop %v764
    %v766 = vmul.f32 %v688, 1.442695
    %v767 = vpow.pop %v766
    %v768 = vmul.f32 %v689, 1.442695
    %v769 = vpow.pop %v768
    %v770 = vmul.f32 %v690, 1.442695
    %v771 = vpow.pop %v770
    %v772 = vmul.f32 %v691, 1.442695
    %v773 = vpow.pop %v772
    %v774 = vmul.f32 %v692, 1.442695
    %v775 = vpow.pop %v774
    %v776 = vmul.f32 %v693, 1.442695
    %v777 = vpow.pop %v776
    %v778 = vmul.f32 %v694, 1.442695
    %v779 = vpow.pop %v778
    %v780 = vmul.f32 %v695, 1.442695
    %v781 = vpow.pop %v780
    %v782 = vmul.f32 %v696, 1.442695
    %v783 = vpow.pop %v782
    %v784 = vmul.f32 %v697, 1.442695
    %v785 = vpow.pop %v784
    %v786 = vmul.f32 %v698, 1.442695
    %v787 = vpow.pop %v786
    %v788 = vmul.f32 %v699, 1.442695
    %v789 = vpow.pop %v788
    %v790 = vmul.f32 %v700, 1.442695
    %v791 = vpow.pop %v790
    %v792 = vmul.f32 %v701, 1.442695
    %v793 = vpow.pop %v792
    %v794 = vmul.f32 %v702, 1.442695
    %v795 = vpow.pop %v794
    %v796 = vmul.f32 %v703, 1.442695
    %v797 = vpow.pop %v796
    %v798 = vmul.f32 %v704, 1.442695
    %v799 = vpow.pop %v798
    %v800 = vmul.f32 %v705, 1.442695
    %v801 = vpow.pop %v800
    %v802 = vmul.f32 %v706, 1.442695
    %v803 = vpow.pop %v802
    %v804 = vmul.f32 %v707, 1.442695
    %v805 = vpow.pop %v804
    %v806 = vmul.f32 %v708, 1.442695
    %v807 = vpow.pop %v806
    %v808 = vmul.f32 %v709, 1.442695
    %v809 = vpow.pop %v808
    %v810 = vmul.f32 %v710, 1.442695
    %v811 = vpow.pop %v810
    %v812 = vmul.f32 %v711, 1.442695
    %v813 = vpow.pop %v812
    %v814 = vmul.f32 %v712, 1.442695
    %v815 = vpow.pop %v814
    %v816 = vmul.f32 %v713, 1.442695
    %v817 = vpow.pop %v816
    %v818 = vmul.f32 %v714, 1.442695
    %v819 = vpow.pop %v818
    %v820 = vmul.f32 %v715, 1.442695
    %v821 = vpow.pop %v820
    %v822 = vmul.f32 %v716, 1.442695
    %v823 = vpow.pop %v822
    %v824 = vmul.f32 %v717, 1.442695
    %v825 = vpow.pop %v824
    %v826 = vmul.f32 %v718, 1.442695
    %v827 = vpow.pop %v826
    %v828 = vmul.f32 %v719, 1.442695
    %v829 = vpow.pop %v828
    %v830 = vmul.f32 %v720, 1.442695
    %v831 = vpow.pop %v830
    %v832 = vmul.f32 %v721, 1.442695
    %v833 = vpow.pop %v832
    %v834 = vmul.f32 %v722, 1.442695
    %v835 = vpow.pop %v834
    %v836 = vmul.f32 %v723, 1.442695
    %v837 = vpow.pop %v836
    %v838 = vmul.f32 %v724, 1.442695
    %v839 = vpow.pop %v838
    %v840 = vmul.f32 %v725, 1.442695
    %v841 = vpow.pop %v840
    %v842 = vmul.f32 %v726, 1.442695
    %v843 = vpow.pop %v842
    %v844 = vmul.f32 %v727, 1.442695
    %v845 = vpow.pop %v844
    %v846 = vmul.f32 %v728, 1.442695
    %v847 = vpow.pop %v846
    %v848 = vmul.f32 %v729, 1.442695
    %v849 = vpow.pop %v848
    %v850 = vmul.f32 %v730, 1.442695
    %v851 = vpow.pop %v850
    %v852 = vmul.f32 %v731, 1.442695
    %v853 = vpow.pop %v852
    %v854 = vmul.f32 %v732, 1.442695
    %v855 = vpow.pop %v854
    %v856 = vmul.f32 %v733, 1.442695
    %v857 = vpow.pop %v856
    %v858 = vmul.f32 %v734, 1.442695
    %v859 = vpow.pop %v858
    %v860 = vmul.f32 %v735, 1.442695
    %v861 = vpow.pop %v860
    %v862 = vmul.f32 %v736, 1.442695
    %v863 = vpow.pop %v862
    %v864 = vmul.f32 %v737, 1.442695
    %v865 = vpow.pop %v864
    %v866 = vadd.f32 %v739, 1.0
    %v867 = vadd.f32 %v741, 1.0
    %v868 = vadd.f32 %v743, 1.0
    %v869 = vadd.f32 %v745, 1.0
    %v870 = vadd.f32 %v747, 1.0
    %v871 = vadd.f32 %v749, 1.0
    %v872 = vadd.f32 %v751, 1.0
    %v873 = vadd.f32 %v753, 1.0
    %v874 = vadd.f32 %v755, 1.0
    %v875 = vadd.f32 %v757, 1.0
    %v876 = vadd.f32 %v759, 1.0
    %v877 = vadd.f32 %v761, 1.0
    %v878 = vadd.f32 %v763, 1.0
    %v879 = vadd.f32 %v765, 1.0
    %v880 = vadd.f32 %v767, 1.0
    %v881 = vadd.f32 %v769, 1.0
    %v882 = vadd.f32 %v771, 1.0
    %v883 = vadd.f32 %v773, 1.0
    %v884 = vadd.f32 %v775, 1.0
    %v885 = vadd.f32 %v777, 1.0
    %v886 = vadd.f32 %v779, 1.0
    %v887 = vadd.f32 %v781, 1.0
    %v888 = vadd.f32 %v783, 1.0
    %v889 = vadd.f32 %v785, 1.0
    %v890 = vadd.f32 %v787, 1.0
    %v891 = vadd.f32 %v789, 1.0
    %v892 = vadd.f32 %v791, 1.0
    %v893 = vadd.f32 %v793, 1.0
    %v894 = vadd.f32 %v795, 1.0
    %v895 = vadd.f32 %v797, 1.0
    %v896 = vadd.f32 %v799, 1.0
    %v897 = vadd.f32 %v801, 1.0
    %v898 = vadd.f32 %v803, 1.0
    %v899 = vadd.f32 %v805, 1.0
    %v900 = vadd.f32 %v807, 1.0
    %v901 = vadd.f32 %v809, 1.0
    %v902 = vadd.f32 %v811, 1.0
    %v903 = vadd.f32 %v813, 1.0
    %v904 = vadd.f32 %v815, 1.0
    %v905 = vadd.f32 %v817, 1.0
    %v906 = vadd.f32 %v819, 1.0
    %v907 = vadd.f32 %v821, 1.0
    %v908 = vadd.f32 %v823, 1.0
    %v909 = vadd.f32 %v825, 1.0
    %v910 = vadd.f32 %v827, 1.0
    %v911 = vadd.f32 %v829, 1.0
    %v912 = vadd.f32 %v831, 1.0
    %v913 = vadd.f32 %v833, 1.0
    %v914 = vadd.f32 %v835, 1.0
    %v915 = vadd.f32 %v837, 1.0
    %v916 = vadd.f32 %v839, 1.0
    %v917 = vadd.f32 %v841, 1.0
    %v918 = vadd.f32 %v843, 1.0
    %v919 = vadd.f32 %v845, 1.0
    %v920 = vadd.f32 %v847, 1.0
    %v921 = vadd.f32 %v849, 1.0
    %v922 = vadd.f32 %v851, 1.0
    %v923 = vadd.f32 %v853, 1.0
    %v924 = vadd.f32 %v855, 1.0
    %v925 = vadd.f32 %v857, 1.0
    %v926 = vadd.f32 %v859, 1.0
    %v927 = vadd.f32 %v861, 1.0
    %v928 = vadd.f32 %v863, 1.0
    %v929 = vadd.f32 %v865, 1.0
    %v930 = vrcp.pop %v866
    %v931 = vmul.f32 1.0, %v930
    %v932 = vrcp.pop %v867
    %v933 = vmul.f32 1.0, %v932
    %v934 = vrcp.pop %v868
    %v935 = vmul.f32 1.0, %v934
    %v936 = vrcp.pop %v869
    %v937 = vmul.f32 1.0, %v936
    %v938 = vrcp.pop %v870
    %v939 = vmul.f32 1.0, %v938
    %v940 = vrcp.pop %v871
    %v941 = vmul.f32 1.0, %v940
    %v942 = vrcp.pop %v872
    %v943 = vmul.f32 1.0, %v942
    %v944 = vrcp.pop %v873
    %v945 = vmul.f32 1.0, %v944
    %v946 = vrcp.pop %v874
    %v947 = vmul.f32 1.0, %v946
    %v948 = vrcp.pop %v875
    %v949 = vmul.f32 1.0, %v948
    %v950 = vrcp.pop %v876
    %v951 = vmul.f32 1.0, %v950
    %v952 = vrcp.pop %v877
    %v953 = vmul.f32 1.0, %v952
    %v954 = vrcp.pop %v878
    %v955 = vmul.f32 1.0, %v954
    %v956 = vrcp.pop %v879
    %v957 = vmul.f32 1.0, %v956
    %v958 = vrcp.pop %v880
    %v959 = vmul.f32 1.0, %v958
    %v960 = vrcp.pop %v881
    %v961 = vmul.f32 1.0, %v960
    %v962 = vrcp.pop %v882
    %v963 = vmul.f32 1.0, %v962
    %v964 = vrcp.pop %v883
    %v965 = vmul.f32 1.0, %v964
    %v966 = vrcp.pop %v884
    %v967 = vmul.f32 1.0, %v966
    %v968 = vrcp.pop %v885
    %v969 = vmul.f32 1.0, %v968
    %v970 = vrcp.pop %v886
    %v971 = vmul.f32 1.0, %v970
    %v972 = vrcp.pop %v887
    %v973 = vmul.f32 1.0, %v972
    %v974 = vrcp.pop %v888
    %v975 = vmul.f32 1.0, %v974
    %v976 = vrcp.pop %v889
    %v977 = vmul.f32 1.0, %v976
    %v978 = vrcp.pop %v890
    %v979 = vmul.f32 1.0, %v978
    %v980 = vrcp.pop %v891
    %v981 = vmul.f32 1.0, %v980
    %v982 = vrcp.pop %v892
    %v983 = vmul.f32 1.0, %v982
    %v984 = vrcp.pop %v893
    %v985 = vmul.f32 1.0, %v984
    %v986 = vrcp.pop %v894
    %v987 = vmul.f32 1.0, %v986
    %v988 = vrcp.pop %v895
    %v989 = vmul.f32 1.0, %v988
    %v990 = vrcp.pop %v896
    %v991 = vmul.f32 1.0, %v990
    %v992 = vrcp.pop %v897
    %v993 = vmul.f32 1.0, %v992
    %v994 = vrcp.pop %v898
    %v995 = vmul.f32 1.0, %v994
    %v996 = vrcp.pop %v899
    %v997 = vmul.f32 1.0, %v996
    %v998 = vrcp.pop %v900
    %v999 = vmul.f32 1.0, %v998
    %v1000 = vrcp.pop %v901
    %v1001 = vmul.f32 1.0, %v1000
    %v1002 = vrcp.pop %v902
    %v1003 = vmul.f32 1.0, %v1002
    %v1004 = vrcp.pop %v903
    %v1005 = vmul.f32 1.0, %v1004
    %v1006 = vrcp.pop %v904
    %v1007 = vmul.f32 1.0, %v1006
    %v1008 = vrcp.pop %v905
    %v1009 = vmul.f32 1.0, %v1008
    %v1010 = vrcp.pop %v906
    %v1011 = vmul.f32 1.0, %v1010
    %v1012 = vrcp.pop %v907
    %v1013 = vmul.f32 1.0, %v1012
    %v1014 = vrcp.pop %v908
    %v1015 = vmul.f32 1.0, %v1014
    %v1016 = vrcp.pop %v909
    %v1017 = vmul.f32 1.0, %v1016
    %v1018 = vrcp.pop %v910
    %v1019 = vmul.f32 1.0, %v1018
    %v1020 = vrcp.pop %v911
    %v1021 = vmul.f32 1.0, %v1020
    %v1022 = vrcp.pop %v912
    %v1023 = vmul.f32 1.0, %v1022
    %v1024 = vrcp.pop %v913
    %v1025 = vmul.f32 1.0, %v1024
    %v1026 = vrcp.pop %v914
    %v1027 = vmul.f32 1.0, %v1026
    %v1028 = vrcp.pop %v915
    %v1029 = vmul.f32 1.0, %v1028
    %v1030 = vrcp.pop %v916
    %v1031 = vmul.f32 1.0, %v1030
    %v1032 = vrcp.pop %v917
    %v1033 = vmul.f32 1.0, %v1032
    %v1034 = vrcp.pop %v918
    %v1035 = vmul.f32 1.0, %v1034
    %v1036 = vrcp.pop %v919
    %v1037 = vmul.f32 1.0, %v1036
    %v1038 = vrcp.pop %v920
    %v1039 = vmul.f32 1.0, %v1038
    %v1040 = vrcp.pop %v921
    %v1041 = vmul.f32 1.0, %v1040
    %v1042 = vrcp.pop %v922
    %v1043 = vmul.f32 1.0, %v1042
    %v1044 = vrcp.pop %v923
    %v1045 = vmul.f32 1.0, %v1044
    %v1046 = vrcp.pop %v924
    %v1047 = vmul.f32 1.0, %v1046
    %v1048 = vrcp.pop %v925
    %v1049 = vmul.f32 1.0, %v1048
    %v1050 = vrcp.pop %v926
    %v1051 = vmul.f32 1.0, %v1050
    %v1052 = vrcp.pop %v927
    %v1053 = vmul.f32 1.0, %v1052
    %v1054 = vrcp.pop %v928
    %v1055 = vmul.f32 1.0, %v1054
    %v1056 = vrcp.pop %v929
    %v1057 = vmul.f32 1.0, %v1056
    %v1058 = vmul.f32 %v356, %v931
    %v1059 = vmul.f32 %v361, %v933
    %v1060 = vmul.f32 %v366, %v935
    %v1061 = vmul.f32 %v371, %v937
    %v1062 = vmul.f32 %v376, %v939
    %v1063 = vmul.f32 %v381, %v941
    %v1064 = vmul.f32 %v386, %v943
    %v1065 = vmul.f32 %v391, %v945
    %v1066 = vmul.f32 %v396, %v947
    %v1067 = vmul.f32 %v401, %v949
    %v1068 = vmul.f32 %v406, %v951
    %v1069 = vmul.f32 %v411, %v953
    %v1070 = vmul.f32 %v416, %v955
    %v1071 = vmul.f32 %v421, %v957
    %v1072 = vmul.f32 %v426, %v959
    %v1073 = vmul.f32 %v431, %v961
    %v1074 = vmul.f32 %v436, %v963
    %v1075 = vmul.f32 %v441, %v965
    %v1076 = vmul.f32 %v446, %v967
    %v1077 = vmul.f32 %v451, %v969
    %v1078 = vmul.f32 %v456, %v971
    %v1079 = vmul.f32 %v461, %v973
    %v1080 = vmul.f32 %v466, %v975
    %v1081 = vmul.f32 %v471, %v977
    %v1082 = vmul.f32 %v476, %v979
    %v1083 = vmul.f32 %v481, %v981
    %v1084 = vmul.f32 %v486, %v983
    %v1085 = vmul.f32 %v491, %v985
    %v1086 = vmul.f32 %v496, %v987
    %v1087 = vmul.f32 %v501, %v989
    %v1088 = vmul.f32 %v506, %v991
    %v1089 = vmul.f32 %v511, %v993
    %v1090 = vmul.f32 %v516, %v995
    %v1091 = vmul.f32 %v521, %v997
    %v1092 = vmul.f32 %v526, %v999
    %v1093 = vmul.f32 %v531, %v1001
    %v1094 = vmul.f32 %v536, %v1003
    %v1095 = vmul.f32 %v541, %v1005
    %v1096 = vmul.f32 %v546, %v1007
    %v1097 = vmul.f32 %v551, %v1009
    %v1098 = vmul.f32 %v556, %v1011
    %v1099 = vmul.f32 %v561, %v1013
    %v1100 = vmul.f32 %v566, %v1015
    %v1101 = vmul.f32 %v571, %v1017
    %v1102 = vmul.f32 %v576, %v1019
    %v1103 = vmul.f32 %v581, %v1021
    %v1104 = vmul.f32 %v586, %v1023
    %v1105 = vmul.f32 %v591, %v1025
    %v1106 = vmul.f32 %v596, %v1027
    %v1107 = vmul.f32 %v601, %v1029
    %v1108 = vmul.f32 %v606, %v1031
    %v1109 = vmul.f32 %v611, %v1033
    %v1110 = vmul.f32 %v616, %v1035
    %v1111 = vmul.f32 %v621, %v1037
    %v1112 = vmul.f32 %v626, %v1039
    %v1113 = vmul.f32 %v631, %v1041
    %v1114 = vmul.f32 %v636, %v1043
    %v1115 = vmul.f32 %v641, %v1045
    %v1116 = vmul.f32 %v646, %v1047
    %v1117 = vmul.f32 %v651, %v1049
    %v1118 = vmul.f32 %v656, %v1051
    %v1119 = vmul.f32 %v661, %v1053
    %v1120 = vmul.f32 %v666, %v1055
    %v1121 = vmul.f32 %v671, %v1057
    %v1122 = vld [vmem:[%s3] sm:$0xff]
    %v1123 = vld [vmem:[%s3 + $0x8] sm:$0xff]
    %v1124 = vld [vmem:[%s3 + $0x10] sm:$0xff]
    %v1125 = vld [vmem:[%s3 + $0x18] sm:$0xff]
    %v1126 = vld [vmem:[%s3 + $0x20] sm:$0xff]
    %v1127 = vld [vmem:[%s3 + $0x28] sm:$0xff]
    %v1128 = vld [vmem:[%s3 + $0x30] sm:$0xff]
    %v1129 = vld [vmem:[%s3 + $0x38] sm:$0xff]
    %v1130 = vld [vmem:[%s3 + $0x40] sm:$0xff]
    %v1131 = vld [vmem:[%s3 + $0x48] sm:$0xff]
    %v1132 = vld [vmem:[%s3 + $0x50] sm:$0xff]
    %v1133 = vld [vmem:[%s3 + $0x58] sm:$0xff]
    %v1134 = vld [vmem:[%s3 + $0x60] sm:$0xff]
    %v1135 = vld [vmem:[%s3 + $0x68] sm:$0xff]
    %v1136 = vld [vmem:[%s3 + $0x70] sm:$0xff]
    %v1137 = vld [vmem:[%s3 + $0x78] sm:$0xff]
    %v1138 = vld [vmem:[%s4] sm:$0x1]
    %v1140 = vlaneseq
    %v1141 = vshrl.u32 %v1140, 7
    %v1142 = vsub.s32 0, %v1141
    %v1143 = vrot.slane %v1138, %v1142
    %1145 = vmatprep.subr.mxu0 0.0
    %1146 = vmatpush1.msra.mxu0 %v1122
    %1147 = vmatprep.subr.mxu0 0.0
    %1148 = vmatpush1.msra.mxu0 %v1123
    %1149 = vmatprep.subr.mxu0 0.0
    %1150 = vmatpush1.msra.mxu0 %v1124
    %1151 = vmatprep.subr.mxu0 0.0
    %1152 = vmatpush1.msra.mxu0 %v1125
    %1153 = vmatprep.subr.mxu0 0.0
    %1154 = vmatpush1.msra.mxu0 %v1126
    %1155 = vmatprep.subr.mxu0 0.0
    %1156 = vmatpush1.msra.mxu0 %v1127
    %1157 = vmatprep.subr.mxu0 0.0
    %1158 = vmatpush1.msra.mxu0 %v1128
    %1159 = vmatprep.subr.mxu0 0.0
    %1160 = vmatpush1.msra.mxu0 %v1129
    %1161 = vmatprep.subr.mxu0 0.0
    %1162 = vmatpush1.msra.mxu0 %v1130
    %1163 = vmatprep.subr.mxu0 0.0
    %1164 = vmatpush1.msra.mxu0 %v1131
    %1165 = vmatprep.subr.mxu0 0.0
    %1166 = vmatpush1.msra.mxu0 %v1132
    %1167 = vmatprep.subr.mxu0 0.0
    %1168 = vmatpush1.msra.mxu0 %v1133
    %1169 = vmatprep.subr.mxu0 0.0
    %1170 = vmatpush1.msra.mxu0 %v1134
    %1171 = vmatprep.subr.mxu0 0.0
    %1172 = vmatpush1.msra.mxu0 %v1135
    %1173 = vmatprep.subr.mxu0 0.0
    %1174 = vmatpush1.msra.mxu0 %v1136
    %1175 = vmatprep.subr.mxu0 0.0
    %1176 = vmatpush1.msra.mxu0 %v1137
    %1177 = vmatprep.subr.mxu0 0.0
    %1178 = vmatpush1.msra.mxu0 0.0
    %1179 = vmatprep.subr.mxu0 0.0
    %1180 = vmatpush1.msra.mxu0 0.0
    %1181 = vmatprep.subr.mxu0 0.0
    %1182 = vmatpush1.msra.mxu0 0.0
    %1183 = vmatprep.subr.mxu0 0.0
    %1184 = vmatpush1.msra.mxu0 0.0
    %1185 = vmatprep.subr.mxu0 0.0
    %1186 = vmatpush1.msra.mxu0 0.0
    %1187 = vmatprep.subr.mxu0 0.0
    %1188 = vmatpush1.msra.mxu0 0.0
    %1189 = vmatprep.subr.mxu0 0.0
    %1190 = vmatpush1.msra.mxu0 0.0
    %1191 = vmatprep.subr.mxu0 0.0
    %1192 = vmatpush1.msra.mxu0 0.0
    %1193 = vmatprep.subr.mxu0 0.0
    %1194 = vmatpush1.msra.mxu0 0.0
    %1195 = vmatprep.subr.mxu0 0.0
    %1196 = vmatpush1.msra.mxu0 0.0
    %1197 = vmatprep.subr.mxu0 0.0
    %1198 = vmatpush1.msra.mxu0 0.0
    %1199 = vmatprep.subr.mxu0 0.0
    %1200 = vmatpush1.msra.mxu0 0.0
    %1201 = vmatprep.subr.mxu0 0.0
    %1202 = vmatpush1.msra.mxu0 0.0
    %1203 = vmatprep.subr.mxu0 0.0
    %1204 = vmatpush1.msra.mxu0 0.0
    %1205 = vmatprep.subr.mxu0 0.0
    %1206 = vmatpush1.msra.mxu0 0.0
    %1207 = vmatprep.subr.mxu0 0.0
    %1208 = vmatpush1.msra.mxu0 0.0
    %1209 = vmatprep.mubr.f32.mxu0 0.0
    %1210 = vmatmul.mubr.f32.gmra.mrb[0].mxu0 %v1058
    %v1211 = vpop.f32.mrb[0].mxu0
    %v1212 = vadd.f32 %v1143, %v1211
    %v1213 = vpop.f32.mrb[0].mxu0
    %1214 = vmatprep.mubr.f32.mxu0 0.0
    %1215 = vmatmul.mubr.f32.gmra.mrb[0].mxu0 %v1059
    %v1216 = vpop.f32.mrb[0].mxu0
    %v1217 = vadd.f32 %v1143, %v1216
    %v1218 = vpop.f32.mrb[0].mxu0
    %1219 = vmatprep.mubr.f32.mxu0 0.0
    %1220 = vmatmul.mubr.f32.gmra.mrb[0].mxu0 %v1060
    %v1221 = vpop.f32.mrb[0].mxu0
    %v1222 = vadd.f32 %v1143, %v1221
    %v1223 = vpop.f32.mrb[0].mxu0
    %1224 = vmatprep.mubr.f32.mxu0 0.0
    %1225 = vmatmul.mubr.f32.gmra.mrb[0].mxu0 %v1061
    %v1226 = vpop.f32.mrb[0].mxu0
    %v1227 = vadd.f32 %v1143, %v1226
    %v1228 = vpop.f32.mrb[0].mxu0
    %1229 = vmatprep.mubr.f32.mxu0 0.0
    %1230 = vmatmul.mubr.f32.gmra.mrb[0].mxu0 %v1062
    %v1231 = vpop.f32.mrb[0].mxu0
    %v1232 = vadd.f32 %v1143, %v1231
    %v1233 = vpop.f32.mrb[0].mxu0
    %1234 = vmatprep.mubr.f32.mxu0 0.0
    %1235 = vmatmul.mubr.f32.gmra.mrb[0].mxu0 %v1063
    %v1236 = vpop.f32.mrb[0].mxu0
    %v1237 = vadd.f32 %v1143, %v1236
    %v1238 = vpop.f32.mrb[0].mxu0
    %1239 = vmatprep.mubr.f32.mxu0 0.0
    %1240 = vmatmul.mubr.f32.gmra.mrb[0].mxu0 %v1064
    %v1241 = vpop.f32.mrb[0].mxu0
    %v1242 = vadd.f32 %v1143, %v1241
    %v1243 = vpop.f32.mrb[0].mxu0
    %1244 = vmatprep.mubr.f32.mxu0 0.0
    %1245 = vmatmul.mubr.f32.gmra.mrb[0].mxu0 %v1065
    %v1246 = vpop.f32.mrb[0].mxu0
    %v1247 = vadd.f32 %v1143, %v1246
    %v1248 = vpop.f32.mrb[0].mxu0
    %1249 = vmatprep.mubr.f32.mxu0 0.0
    %1250 = vmatmul.mubr.f32.gmra.mrb[0].mxu0 %v1066
    %v1251 = vpop.f32.mrb[0].mxu0
    %v1252 = vadd.f32 %v1143, %v1251
    %v1253 = vpop.f32.mrb[0].mxu0
    %1254 = vmatprep.mubr.f32.mxu0 0.0
    %1255 = vmatmul.mubr.f32.gmra.mrb[0].mxu0 %v1067
    %v1256 = vpop.f32.mrb[0].mxu0
    %v1257 = vadd.f32 %v1143, %v1256
    %v1258 = vpop.f32.mrb[0].mxu0
    %1259 = vmatprep.mubr.f32.mxu0 0.0
    %1260 = vmatmul.mubr.f32.gmra.mrb[0].mxu0 %v1068
    %v1261 = vpop.f32.mrb[0].mxu0
    %v1262 = vadd.f32 %v1143, %v1261
    %v1263 = vpop.f32.mrb[0].mxu0
    %1264 = vmatprep.mubr.f32.mxu0 0.0
    %1265 = vmatmul.mubr.f32.gmra.mrb[0].mxu0 %v1069
    %v1266 = vpop.f32.mrb[0].mxu0
    %v1267 = vadd.f32 %v1143, %v1266
    %v1268 = vpop.f32.mrb[0].mxu0
    %1269 = vmatprep.mubr.f32.mxu0 0.0
    %1270 = vmatmul.mubr.f32.gmra.mrb[0].mxu0 %v1070
    %v1271 = vpop.f32.mrb[0].mxu0
    %v1272 = vadd.f32 %v1143, %v1271
    %v1273 = vpop.f32.mrb[0].mxu0
    %1274 = vmatprep.mubr.f32.mxu0 0.0
    %1275 = vmatmul.mubr.f32.gmra.mrb[0].mxu0 %v1071
    %v1276 = vpop.f32.mrb[0].mxu0
    %v1277 = vadd.f32 %v1143, %v1276
    %v1278 = vpop.f32.mrb[0].mxu0
    %1279 = vmatprep.mubr.f32.mxu0 0.0
    %1280 = vmatmul.mubr.f32.gmra.mrb[0].mxu0 %v1072
    %v1281 = vpop.f32.mrb[0].mxu0
    %v1282 = vadd.f32 %v1143, %v1281
    %v1283 = vpop.f32.mrb[0].mxu0
    %1284 = vmatprep.mubr.f32.mxu0 0.0
    %1285 = vmatmul.mubr.f32.gmra.mrb[0].mxu0 %v1073
    %v1286 = vpop.f32.mrb[0].mxu0
    %v1287 = vadd.f32 %v1143, %v1286
    %v1288 = vpop.f32.mrb[0].mxu0
    %1289 = vmatprep.mubr.f32.mxu0 0.0
    %1290 = vmatmul.mubr.f32.gmra.mrb[0].mxu0 %v1074
    %v1291 = vpop.f32.mrb[0].mxu0
    %v1292 = vadd.f32 %v1143, %v1291
    %v1293 = vpop.f32.mrb[0].mxu0
    %1294 = vmatprep.mubr.f32.mxu0 0.0
    %1295 = vmatmul.mubr.f32.gmra.mrb[0].mxu0 %v1075
    %v1296 = vpop.f32.mrb[0].mxu0
    %v1297 = vadd.f32 %v1143, %v1296
    %v1298 = vpop.f32.mrb[0].mxu0
    %1299 = vmatprep.mubr.f32.mxu0 0.0
    %1300 = vmatmul.mubr.f32.gmra.mrb[0].mxu0 %v1076
    %v1301 = vpop.f32.mrb[0].mxu0
    %v1302 = vadd.f32 %v1143, %v1301
    %v1303 = vpop.f32.mrb[0].mxu0
    %1304 = vmatprep.mubr.f32.mxu0 0.0
    %1305 = vmatmul.mubr.f32.gmra.mrb[0].mxu0 %v1077
    %v1306 = vpop.f32.mrb[0].mxu0
    %v1307 = vadd.f32 %v1143, %v1306
    %v1308 = vpop.f32.mrb[0].mxu0
    %1309 = vmatprep.mubr.f32.mxu0 0.0
    %1310 = vmatmul.mubr.f32.gmra.mrb[0].mxu0 %v1078
    %v1311 = vpop.f32.mrb[0].mxu0
    %v1312 = vadd.f32 %v1143, %v1311
    %v1313 = vpop.f32.mrb[0].mxu0
    %1314 = vmatprep.mubr.f32.mxu0 0.0
    %1315 = vmatmul.mubr.f32.gmra.mrb[0].mxu0 %v1079
    %v1316 = vpop.f32.mrb[0].mxu0
    %v1317 = vadd.f32 %v1143, %v1316
    %v1318 = vpop.f32.mrb[0].mxu0
    %1319 = vmatprep.mubr.f32.mxu0 0.0
    %1320 = vmatmul.mubr.f32.gmra.mrb[0].mxu0 %v1080
    %v1321 = vpop.f32.mrb[0].mxu0
    %v1322 = vadd.f32 %v1143, %v1321
    %v1323 = vpop.f32.mrb[0].mxu0
    %1324 = vmatprep.mubr.f32.mxu0 0.0
    %1325 = vmatmul.mubr.f32.gmra.mrb[0].mxu0 %v1081
    %v1326 = vpop.f32.mrb[0].mxu0
    %v1327 = vadd.f32 %v1143, %v1326
    %v1328 = vpop.f32.mrb[0].mxu0
    %1329 = vmatprep.mubr.f32.mxu0 0.0
    %1330 = vmatmul.mubr.f32.gmra.mrb[0].mxu0 %v1082
    %v1331 = vpop.f32.mrb[0].mxu0
    %v1332 = vadd.f32 %v1143, %v1331
    %v1333 = vpop.f32.mrb[0].mxu0
    %1334 = vmatprep.mubr.f32.mxu0 0.0
    %1335 = vmatmul.mubr.f32.gmra.mrb[0].mxu0 %v1083
    %v1336 = vpop.f32.mrb[0].mxu0
    %v1337 = vadd.f32 %v1143, %v1336
    %v1338 = vpop.f32.mrb[0].mxu0
    %1339 = vmatprep.mubr.f32.mxu0 0.0
    %1340 = vmatmul.mubr.f32.gmra.mrb[0].mxu0 %v1084
    %v1341 = vpop.f32.mrb[0].mxu0
    %v1342 = vadd.f32 %v1143, %v1341
    %v1343 = vpop.f32.mrb[0].mxu0
    %1344 = vmatprep.mubr.f32.mxu0 0.0
    %1345 = vmatmul.mubr.f32.gmra.mrb[0].mxu0 %v1085
    %v1346 = vpop.f32.mrb[0].mxu0
    %v1347 = vadd.f32 %v1143, %v1346
    %v1348 = vpop.f32.mrb[0].mxu0
    %1349 = vmatprep.mubr.f32.mxu0 0.0
    %1350 = vmatmul.mubr.f32.gmra.mrb[0].mxu0 %v1086
    %v1351 = vpop.f32.mrb[0].mxu0
    %v1352 = vadd.f32 %v1143, %v1351
    %v1353 = vpop.f32.mrb[0].mxu0
    %1354 = vmatprep.mubr.f32.mxu0 0.0
    %1355 = vmatmul.mubr.f32.gmra.mrb[0].mxu0 %v1087
    %v1356 = vpop.f32.mrb[0].mxu0
    %v1357 = vadd.f32 %v1143, %v1356
    %v1358 = vpop.f32.mrb[0].mxu0
    %1359 = vmatprep.mubr.f32.mxu0 0.0
    %1360 = vmatmul.mubr.f32.gmra.mrb[0].mxu0 %v1088
    %v1361 = vpop.f32.mrb[0].mxu0
    %v1362 = vadd.f32 %v1143, %v1361
    %v1363 = vpop.f32.mrb[0].mxu0
    %1364 = vmatprep.mubr.f32.mxu0 0.0
    %1365 = vmatmul.mubr.f32.gmra.mrb[0].mxu0 %v1089
    %v1366 = vpop.f32.mrb[0].mxu0
    %v1367 = vadd.f32 %v1143, %v1366
    %v1368 = vpop.f32.mrb[0].mxu0
    %1369 = vmatprep.mubr.f32.mxu0 0.0
    %1370 = vmatmul.mubr.f32.gmra.mrb[0].mxu0 %v1090
    %v1371 = vpop.f32.mrb[0].mxu0
    %v1372 = vadd.f32 %v1143, %v1371
    %v1373 = vpop.f32.mrb[0].mxu0
    %1374 = vmatprep.mubr.f32.mxu0 0.0
    %1375 = vmatmul.mubr.f32.gmra.mrb[0].mxu0 %v1091
    %v1376 = vpop.f32.mrb[0].mxu0
    %v1377 = vadd.f32 %v1143, %v1376
    %v1378 = vpop.f32.mrb[0].mxu0
    %1379 = vmatprep.mubr.f32.mxu0 0.0
    %1380 = vmatmul.mubr.f32.gmra.mrb[0].mxu0 %v1092
    %v1381 = vpop.f32.mrb[0].mxu0
    %v1382 = vadd.f32 %v1143, %v1381
    %v1383 = vpop.f32.mrb[0].mxu0
    %1384 = vmatprep.mubr.f32.mxu0 0.0
    %1385 = vmatmul.mubr.f32.gmra.mrb[0].mxu0 %v1093
    %v1386 = vpop.f32.mrb[0].mxu0
    %v1387 = vadd.f32 %v1143, %v1386
    %v1388 = vpop.f32.mrb[0].mxu0
    %1389 = vmatprep.mubr.f32.mxu0 0.0
    %1390 = vmatmul.mubr.f32.gmra.mrb[0].mxu0 %v1094
    %v1391 = vpop.f32.mrb[0].mxu0
    %v1392 = vadd.f32 %v1143, %v1391
    %v1393 = vpop.f32.mrb[0].mxu0
    %1394 = vmatprep.mubr.f32.mxu0 0.0
    %1395 = vmatmul.mubr.f32.gmra.mrb[0].mxu0 %v1095
    %v1396 = vpop.f32.mrb[0].mxu0
    %v1397 = vadd.f32 %v1143, %v1396
    %v1398 = vpop.f32.mrb[0].mxu0
    %1399 = vmatprep.mubr.f32.mxu0 0.0
    %1400 = vmatmul.mubr.f32.gmra.mrb[0].mxu0 %v1096
    %v1401 = vpop.f32.mrb[0].mxu0
    %v1402 = vadd.f32 %v1143, %v1401
    %v1403 = vpop.f32.mrb[0].mxu0
    %1404 = vmatprep.mubr.f32.mxu0 0.0
    %1405 = vmatmul.mubr.f32.gmra.mrb[0].mxu0 %v1097
    %v1406 = vpop.f32.mrb[0].mxu0
    %v1407 = vadd.f32 %v1143, %v1406
    %v1408 = vpop.f32.mrb[0].mxu0
    %1409 = vmatprep.mubr.f32.mxu0 0.0
    %1410 = vmatmul.mubr.f32.gmra.mrb[0].mxu0 %v1098
    %v1411 = vpop.f32.mrb[0].mxu0
    %v1412 = vadd.f32 %v1143, %v1411
    %v1413 = vpop.f32.mrb[0].mxu0
    %1414 = vmatprep.mubr.f32.mxu0 0.0
    %1415 = vmatmul.mubr.f32.gmra.mrb[0].mxu0 %v1099
    %v1416 = vpop.f32.mrb[0].mxu0
    %v1417 = vadd.f32 %v1143, %v1416
    %v1418 = vpop.f32.mrb[0].mxu0
    %1419 = vmatprep.mubr.f32.mxu0 0.0
    %1420 = vmatmul.mubr.f32.gmra.mrb[0].mxu0 %v1100
    %v1421 = vpop.f32.mrb[0].mxu0
    %v1422 = vadd.f32 %v1143, %v1421
    %v1423 = vpop.f32.mrb[0].mxu0
    %1424 = vmatprep.mubr.f32.mxu0 0.0
    %1425 = vmatmul.mubr.f32.gmra.mrb[0].mxu0 %v1101
    %v1426 = vpop.f32.mrb[0].mxu0
    %v1427 = vadd.f32 %v1143, %v1426
    %v1428 = vpop.f32.mrb[0].mxu0
    %1429 = vmatprep.mubr.f32.mxu0 0.0
    %1430 = vmatmul.mubr.f32.gmra.mrb[0].mxu0 %v1102
    %v1431 = vpop.f32.mrb[0].mxu0
    %v1432 = vadd.f32 %v1143, %v1431
    %v1433 = vpop.f32.mrb[0].mxu0
    %1434 = vmatprep.mubr.f32.mxu0 0.0
    %1435 = vmatmul.mubr.f32.gmra.mrb[0].mxu0 %v1103
    %v1436 = vpop.f32.mrb[0].mxu0
    %v1437 = vadd.f32 %v1143, %v1436
    %v1438 = vpop.f32.mrb[0].mxu0
    %1439 = vmatprep.mubr.f32.mxu0 0.0
    %1440 = vmatmul.mubr.f32.gmra.mrb[0].mxu0 %v1104
    %v1441 = vpop.f32.mrb[0].mxu0
    %v1442 = vadd.f32 %v1143, %v1441
    %v1443 = vpop.f32.mrb[0].mxu0
    %1444 = vmatprep.mubr.f32.mxu0 0.0
    %1445 = vmatmul.mubr.f32.gmra.mrb[0].mxu0 %v1105
    %v1446 = vpop.f32.mrb[0].mxu0
    %v1447 = vadd.f32 %v1143, %v1446
    %v1448 = vpop.f32.mrb[0].mxu0
    %1449 = vmatprep.mubr.f32.mxu0 0.0
    %1450 = vmatmul.mubr.f32.gmra.mrb[0].mxu0 %v1106
    %v1451 = vpop.f32.mrb[0].mxu0
    %v1452 = vadd.f32 %v1143, %v1451
    %v1453 = vpop.f32.mrb[0].mxu0
    %1454 = vmatprep.mubr.f32.mxu0 0.0
    %1455 = vmatmul.mubr.f32.gmra.mrb[0].mxu0 %v1107
    %v1456 = vpop.f32.mrb[0].mxu0
    %v1457 = vadd.f32 %v1143, %v1456
    %v1458 = vpop.f32.mrb[0].mxu0
    %1459 = vmatprep.mubr.f32.mxu0 0.0
    %1460 = vmatmul.mubr.f32.gmra.mrb[0].mxu0 %v1108
    %v1461 = vpop.f32.mrb[0].mxu0
    %v1462 = vadd.f32 %v1143, %v1461
    %v1463 = vpop.f32.mrb[0].mxu0
    %1464 = vmatprep.mubr.f32.mxu0 0.0
    %1465 = vmatmul.mubr.f32.gmra.mrb[0].mxu0 %v1109
    %v1466 = vpop.f32.mrb[0].mxu0
    %v1467 = vadd.f32 %v1143, %v1466
    %v1468 = vpop.f32.mrb[0].mxu0
    %1469 = vmatprep.mubr.f32.mxu0 0.0
    %1470 = vmatmul.mubr.f32.gmra.mrb[0].mxu0 %v1110
    %v1471 = vpop.f32.mrb[0].mxu0
    %v1472 = vadd.f32 %v1143, %v1471
    %v1473 = vpop.f32.mrb[0].mxu0
    %1474 = vmatprep.mubr.f32.mxu0 0.0
    %1475 = vmatmul.mubr.f32.gmra.mrb[0].mxu0 %v1111
    %v1476 = vpop.f32.mrb[0].mxu0
    %v1477 = vadd.f32 %v1143, %v1476
    %v1478 = vpop.f32.mrb[0].mxu0
    %1479 = vmatprep.mubr.f32.mxu0 0.0
    %1480 = vmatmul.mubr.f32.gmra.mrb[0].mxu0 %v1112
    %v1481 = vpop.f32.mrb[0].mxu0
    %v1482 = vadd.f32 %v1143, %v1481
    %v1483 = vpop.f32.mrb[0].mxu0
    %1484 = vmatprep.mubr.f32.mxu0 0.0
    %1485 = vmatmul.mubr.f32.gmra.mrb[0].mxu0 %v1113
    %v1486 = vpop.f32.mrb[0].mxu0
    %v1487 = vadd.f32 %v1143, %v1486
    %v1488 = vpop.f32.mrb[0].mxu0
    %1489 = vmatprep.mubr.f32.mxu0 0.0
    %1490 = vmatmul.mubr.f32.gmra.mrb[0].mxu0 %v1114
    %v1491 = vpop.f32.mrb[0].mxu0
    %v1492 = vadd.f32 %v1143, %v1491
    %v1493 = vpop.f32.mrb[0].mxu0
    %1494 = vmatprep.mubr.f32.mxu0 0.0
    %1495 = vmatmul.mubr.f32.gmra.mrb[0].mxu0 %v1115
    %v1496 = vpop.f32.mrb[0].mxu0
    %v1497 = vadd.f32 %v1143, %v1496
    %v1498 = vpop.f32.mrb[0].mxu0
    %1499 = vmatprep.mubr.f32.mxu0 0.0
    %1500 = vmatmul.mubr.f32.gmra.mrb[0].mxu0 %v1116
    %v1501 = vpop.f32.mrb[0].mxu0
    %v1502 = vadd.f32 %v1143, %v1501
    %v1503 = vpop.f32.mrb[0].mxu0
    %1504 = vmatprep.mubr.f32.mxu0 0.0
    %1505 = vmatmul.mubr.f32.gmra.mrb[0].mxu0 %v1117
    %v1506 = vpop.f32.mrb[0].mxu0
    %v1507 = vadd.f32 %v1143, %v1506
    %v1508 = vpop.f32.mrb[0].mxu0
    %1509 = vmatprep.mubr.f32.mxu0 0.0
    %1510 = vmatmul.mubr.f32.gmra.mrb[0].mxu0 %v1118
    %v1511 = vpop.f32.mrb[0].mxu0
    %v1512 = vadd.f32 %v1143, %v1511
    %v1513 = vpop.f32.mrb[0].mxu0
    %1514 = vmatprep.mubr.f32.mxu0 0.0
    %1515 = vmatmul.mubr.f32.gmra.mrb[0].mxu0 %v1119
    %v1516 = vpop.f32.mrb[0].mxu0
    %v1517 = vadd.f32 %v1143, %v1516
    %v1518 = vpop.f32.mrb[0].mxu0
    %1519 = vmatprep.mubr.f32.mxu0 0.0
    %1520 = vmatmul.mubr.f32.gmra.mrb[0].mxu0 %v1120
    %v1521 = vpop.f32.mrb[0].mxu0
    %v1522 = vadd.f32 %v1143, %v1521
    %v1523 = vpop.f32.mrb[0].mxu0
    %1524 = vmatprep.mubr.f32.mxu0 0.0
    %1525 = vmatmul.mubr.f32.gmra.mrb[0].mxu0 %v1121
    %v1526 = vpop.f32.mrb[0].mxu0
    %v1527 = vadd.f32 %v1143, %v1526
    %v1528 = vpop.f32.mrb[0].mxu0
    %1529 = vdwg.mxu0
    %1530 = vst [vmem:[#allocation2] sm:$0xff] %v1212
    %1531 = vst [vmem:[#allocation2 + $0x8] sm:$0xff] %v1217
    %1532 = vst [vmem:[#allocation2 + $0x10] sm:$0xff] %v1222
    %1533 = vst [vmem:[#allocation2 + $0x18] sm:$0xff] %v1227
    %1534 = vst [vmem:[#allocation2 + $0x20] sm:$0xff] %v1232
    %1535 = vst [vmem:[#allocation2 + $0x28] sm:$0xff] %v1237
    %1536 = vst [vmem:[#allocation2 + $0x30] sm:$0xff] %v1242
    %1537 = vst [vmem:[#allocation2 + $0x38] sm:$0xff] %v1247
    %1538 = vst [vmem:[#allocation2 + $0x40] sm:$0xff] %v1252
    %1539 = vst [vmem:[#allocation2 + $0x48] sm:$0xff] %v1257
    %1540 = vst [vmem:[#allocation2 + $0x50] sm:$0xff] %v1262
    %1541 = vst [vmem:[#allocation2 + $0x58] sm:$0xff] %v1267
    %1542 = vst [vmem:[#allocation2 + $0x60] sm:$0xff] %v1272
    %1543 = vst [vmem:[#allocation2 + $0x68] sm:$0xff] %v1277
    %1544 = vst [vmem:[#allocation2 + $0x70] sm:$0xff] %v1282
    %1545 = vst [vmem:[#allocation2 + $0x78] sm:$0xff] %v1287
    %1546 = vst [vmem:[#allocation2 + $0x80] sm:$0xff] %v1292
    %1547 = vst [vmem:[#allocation2 + $0x88] sm:$0xff] %v1297
    %1548 = vst [vmem:[#allocation2 + $0x90] sm:$0xff] %v1302
    %1549 = vst [vmem:[#allocation2 + $0x98] sm:$0xff] %v1307
    %1550 = vst [vmem:[#allocation2 + $0xa0] sm:$0xff] %v1312
    %1551 = vst [vmem:[#allocation2 + $0xa8] sm:$0xff] %v1317
    %1552 = vst [vmem:[#allocation2 + $0xb0] sm:$0xff] %v1322
    %1553 = vst [vmem:[#allocation2 + $0xb8] sm:$0xff] %v1327
    %1554 = vst [vmem:[#allocation2 + $0xc0] sm:$0xff] %v1332
    %1555 = vst [vmem:[#allocation2 + $0xc8] sm:$0xff] %v1337
    %1556 = vst [vmem:[#allocation2 + $0xd0] sm:$0xff] %v1342
    %1557 = vst [vmem:[#allocation2 + $0xd8] sm:$0xff] %v1347
    %1558 = vst [vmem:[#allocation2 + $0xe0] sm:$0xff] %v1352
    %1559 = vst [vmem:[#allocation2 + $0xe8] sm:$0xff] %v1357
    %1560 = vst [vmem:[#allocation2 + $0xf0] sm:$0xff] %v1362
    %1561 = vst [vmem:[#allocation2 + $0xf8] sm:$0xff] %v1367
    %1562 = vst [vmem:[#allocation2 + $0x100] sm:$0xff] %v1372
    %1563 = vst [vmem:[#allocation2 + $0x108] sm:$0xff] %v1377
    %1564 = vst [vmem:[#allocation2 + $0x110] sm:$0xff] %v1382
    %1565 = vst [vmem:[#allocation2 + $0x118] sm:$0xff] %v1387
    %1566 = vst [vmem:[#allocation2 + $0x120] sm:$0xff] %v1392
    %1567 = vst [vmem:[#allocation2 + $0x128] sm:$0xff] %v1397
    %1568 = vst [vmem:[#allocation2 + $0x130] sm:$0xff] %v1402
    %1569 = vst [vmem:[#allocation2 + $0x138] sm:$0xff] %v1407
    %1570 = vst [vmem:[#allocation2 + $0x140] sm:$0xff] %v1412
    %1571 = vst [vmem:[#allocation2 + $0x148] sm:$0xff] %v1417
    %1572 = vst [vmem:[#allocation2 + $0x150] sm:$0xff] %v1422
    %1573 = vst [vmem:[#allocation2 + $0x158] sm:$0xff] %v1427
    %1574 = vst [vmem:[#allocation2 + $0x160] sm:$0xff] %v1432
    %1575 = vst [vmem:[#allocation2 + $0x168] sm:$0xff] %v1437
    %1576 = vst [vmem:[#allocation2 + $0x170] sm:$0xff] %v1442
    %1577 = vst [vmem:[#allocation2 + $0x178] sm:$0xff] %v1447
    %1578 = vst [vmem:[#allocation2 + $0x180] sm:$0xff] %v1452
    %1579 = vst [vmem:[#allocation2 + $0x188] sm:$0xff] %v1457
    %1580 = vst [vmem:[#allocation2 + $0x190] sm:$0xff] %v1462
    %1581 = vst [vmem:[#allocation2 + $0x198] sm:$0xff] %v1467
    %1582 = vst [vmem:[#allocation2 + $0x1a0] sm:$0xff] %v1472
    %1583 = vst [vmem:[#allocation2 + $0x1a8] sm:$0xff] %v1477
    %1584 = vst [vmem:[#allocation2 + $0x1b0] sm:$0xff] %v1482
    %1585 = vst [vmem:[#allocation2 + $0x1b8] sm:$0xff] %v1487
    %1586 = vst [vmem:[#allocation2 + $0x1c0] sm:$0xff] %v1492
    %1587 = vst [vmem:[#allocation2 + $0x1c8] sm:$0xff] %v1497
    %1588 = vst [vmem:[#allocation2 + $0x1d0] sm:$0xff] %v1502
    %1589 = vst [vmem:[#allocation2 + $0x1d8] sm:$0xff] %v1507
    %1590 = vst [vmem:[#allocation2 + $0x1e0] sm:$0xff] %v1512
    %1591 = vst [vmem:[#allocation2 + $0x1e8] sm:$0xff] %v1517
    %1592 = vst [vmem:[#allocation2 + $0x1f0] sm:$0xff] %v1522
    %1593 = vst [vmem:[#allocation2 + $0x1f8] sm:$0xff] %v1527
    // Predicated region
    $region22: #{tpu_custom_call.1} parent=1 // pred_check
      _
    $region23: #{tpu_custom_call.1} parent=1 // pred_check_branch
      %1595 = sbr.rel (0) target = $region25
    $region24: #{tpu_custom_call.1} parent=1 // pred_region
      %s1597 = ssub.s32 8192, 8192
      %1598 = vsyncadd [#allocation3], %s1597
      %s1599 = sshll.u32 [#allocation2], 4
      %s1600 = int_to_ptr.vmem [resolvable:$true] %s1599
      %1605 = dma.vmem_to_hbm [thread:$0]  %s1600, 8192, %s5, [#allocation3], 128, 128, 8
    $region25: #{tpu_custom_call.1} parent=1 // pred_fallthru
      _
    // Predicated region
    $region26: #{tpu_custom_call.1} parent=1 // pred_check
      _
    $region27: #{tpu_custom_call.1} parent=1 // pred_check_branch
      %1607 = sbr.rel (0) target = $region29
    $region28: #{tpu_custom_call.1} parent=1 // pred_region
      %1608 = dma.done [#allocation3], 8192
    $region29: #{tpu_custom_call.1} parent=1 // pred_fallthru
      _
    %1609 = vsyncpa [#allocation3], 1

</llo_original>
